<compile_context>
chip_gen: v7x
topology: tpu7x:2x2x1
jax: 0.10.0
libtpu: 0.0.40
codegen_flags: <defaults>
</compile_context>

<pallas_src>
import functools

import jax
import jax.numpy as jnp
from jax.experimental import pallas as pl
from jax.experimental.pallas import tpu as pltpu


# ---------------------------------------------------------------------------
# Parameter-slab layout (shared by host packing and the kernel)
# ---------------------------------------------------------------------------
def _slab_rows(E, H):
    r_wih = 0                                   # rows [0, E)        : W_ih^T   (E, 3H)
    r_whh = E                                   # rows [E, E+H)      : W_hh^T   (H, 3H)
    r_wlin = E + H                              # rows [E+H, E+2H)   : W_lin1^T (H, 4H)
    r_misc = ((E + 2 * H + 7) // 8) * 8         # 8 rows of tiny params (one f32 tile)
    return r_wih, r_whh, r_wlin, r_misc, r_misc + 8


def _pack_param_slab(params, C, E, H):
    """Pack every small weight/bias into a single (rows, 4H) f32 slab -> one DMA."""
    r_wih, r_whh, r_wlin, r_misc, n_rows = _slab_rows(E, H)
    W = 4 * H
    slab = jnp.zeros((n_rows, W), jnp.float32)
    slab = slab.at[r_wih:r_wih + E, 0:3 * H].set(params["w_ih_t"])
    slab = slab.at[r_whh:r_whh + H, 0:3 * H].set(params["w_hh_t"])
    slab = slab.at[r_wlin:r_wlin + H, 0:4 * H].set(params["w_lin1_t"])

    misc = jnp.zeros((8, W), jnp.float32)
    misc = misc.at[0, 0:3 * H].set(params["b_ih"][0])
    misc = misc.at[1, 0:3 * H].set(params["b_hh"][0])
    misc = misc.at[2, 0:4 * H].set(params["b_lin1"][0])
    misc = misc.at[3:5, 0:C].set(params["w_rel1"].T)          # (2, C)
    misc = misc.at[3:5, C:2 * C].set(params["w_root1"].T)     # (2, C)
    misc = misc.at[3:5, 2 * C:2 * C + 1].set(params["b1"].T)  # (2, 1)
    misc = misc.at[5:6, 0:2].set(params["w_rel2"].T)          # (1, 2)
    misc = misc.at[5:6, 2:4].set(params["w_root2"].T)         # (1, 2)
    misc = misc.at[5:6, 4:5].set(params["b2"])                # (1, 1)
    slab = slab.at[r_misc:r_misc + 8, :].set(misc)
    return slab


# ---------------------------------------------------------------------------
# Single fused forward kernel
# ---------------------------------------------------------------------------
def fused_forward_kernel(at_ref, xt_ref, slab_ref, o_ref, seq_scr, *, B, T, E, H, C):
    f32 = jnp.float32
    bf16 = jnp.bfloat16
    r_wih, r_whh, r_wlin, r_misc, _ = _slab_rows(E, H)

    at = at_ref[...]                                   # (N, N) bf16 -- loaded once, reused
    xt = xt_ref[...]                                   # (C, N) f32

    # tiny params: one aligned (8, 4H) load, then static value slices
    misc = slab_ref[r_misc:r_misc + 8, :]
    b_ih = misc[0:1, :]                                # (1, 4H) -- lanes 3H:4H are zero pad
    b_hh = misc[1:2, :]
    b_lin = misc[2:3, :]
    w_rel1_t = misc[3:5, 0:C]                          # (2, C)
    w_root1_t = misc[3:5, C:2 * C]                     # (2, C)
    b1_t = misc[3:5, 2 * C:2 * C + 1]                  # (2, 1)
    w_rel2_t = misc[5:6, 0:2]                          # (1, 2)
    w_root2_t = misc[5:6, 2:4]                         # (1, 2)
    b2_t = misc[5:6, 4:5]                              # (1, 1)

    # ---- GraphConv1 + ReLU (feature-major): h1^T = relu(Wr^T (x^T A^T) + Wl^T x^T + b^T)
    aggr1_t = jnp.dot(xt.astype(bf16), at, preferred_element_type=f32)          # (C, N) f32
    h1_t = jnp.maximum(
        jnp.dot(w_rel1_t, aggr1_t, preferred_element_type=f32)
        + jnp.dot(w_root1_t, xt, preferred_element_type=f32) + b1_t, 0.0)       # (2, N)

    # ---- GraphConv2 + ReLU ----
    aggr2_t = jnp.dot(h1_t.astype(bf16), at, preferred_element_type=f32)        # (2, N) f32
    h2_t = jnp.maximum(
        jnp.dot(w_rel2_t, aggr2_t, preferred_element_type=f32)
        + jnp.dot(w_root2_t, h1_t, preferred_element_type=f32) + b2_t, 0.0)     # (1, N)
    # TODO(synk): F.dropout(p=dr/2) and F.dropout(p=dr) skipped -- inference (identity).

    # ---- rearrange '(bs g e) f -> bs g (e f)'  +  time-major permutation ----
    # seq_scr[t*B + b, :] = h2[(b*T + t)*E : (b*T + t + 1)*E]   (8 static (1,E) stores)
    for t in range(T):
        for b in range(B):
            s = b * T + t
            seq_scr[t * B + b:t * B + b + 1, :] = h2_t[:, s * E:(s + 1) * E]
    seq = seq_scr[...]                                                          # (T*B, E)

    # ---- GRU: input projection hoisted out of the recurrence ----
    w_ih = slab_ref[r_wih:r_wih + E, :]                                         # (E, 4H), cols 3H:4H zero
    w_hh = slab_ref[r_whh:r_whh + H, :]                                         # (H, 4H)
    gi_all = jnp.dot(seq, w_ih, preferred_element_type=f32) + b_ih              # (T*B, 4H)

    h = jnp.zeros((B, H), f32)
    for t in range(T):                               # T small & static -> fully unrolled
        gi = gi_all[t * B:(t + 1) * B, :]                                       # (B, 4H)
        gh = jnp.dot(h, w_hh, preferred_element_type=f32) + b_hh                # (B, 4H)
        r = jax.nn.sigmoid(gi[:, 0:H] + gh[:, 0:H])
        z = jax.nn.sigmoid(gi[:, H:2 * H] + gh[:, H:2 * H])
        n = jnp.tanh(gi[:, 2 * H:3 * H] + r * gh[:, 2 * H:3 * H])
        h = (1.0 - z) * n + z * h

    # ---- lin1 -> softmax(dim=-1): exact divide, lane-dense (B, 4H) output ----
    w_lin = slab_ref[r_wlin:r_wlin + H, :]                                      # (H, 4H)
    logits = jnp.dot(h, w_lin, preferred_element_type=f32) + b_lin              # (B, 4H)
    m = jnp.max(logits, axis=-1, keepdims=True)
    e = jnp.exp(logits - m)
    o_ref[...] = e / jnp.sum(e, axis=-1, keepdims=True)


# ---------------------------------------------------------------------------
# Wrapper: transpose / bf16-cast A, pack the parameter slab, call the fused kernel.
# ---------------------------------------------------------------------------
def test_model_forward(params, A, x, bs, n_graphs, nodes_per_graph, hidden):
    B, T, E, H = bs, n_graphs, nodes_per_graph, hidden
    C = x.shape[1]

    at = A.T.astype(jnp.bfloat16)          # bf16 MXU operand; f32 accumulation in-kernel
    xt = x.T.astype(jnp.float32)           # (C, N) feature-major
    slab = _pack_param_slab(params, C, E, H)

    kernel = functools.partial(fused_forward_kernel, B=B, T=T, E=E, H=H, C=C)
    vmem = pl.BlockSpec(memory_space=pltpu.MemorySpace.VMEM)

    return pl.pallas_call(
        kernel,
        out_shape=jax.ShapeDtypeStruct((B, 4 * H), jnp.float32),
        in_specs=[vmem, vmem, vmem],
        out_specs=vmem,
        scratch_shapes=[pltpu.VMEM((T * B, E), jnp.float32)],   # seq rearrange buffer
    )(at, xt, slab)


# ---------------------------------------------------------------------------
# Pure-JAX f32 reference (for correctness validation only)
# ---------------------------------------------------------------------------
def reference_forward(params, A, x, bs, n_graphs, nodes_per_graph, hidden):
    H = hidden
    aggr1 = A @ x
    h1 = jnp.maximum(aggr1 @ params["w_rel1"] + x @ params["w_root1"] + params["b1"], 0.0)
    aggr2 = A @ h1
    h2 = jnp.maximum(aggr2 @ params["w_rel2"] + h1 @ params["w_root2"] + params["b2"], 0.0)
    seq = h2.reshape(bs, n_graphs, nodes_per_graph)          # '(bs g e) f -> bs g (e f)'
    h = jnp.zeros((bs, H), jnp.float32)
    for t in range(n_graphs):
        gi = seq[:, t, :] @ params["w_ih_t"] + params["b_ih"]
        gh = h @ params["w_hh_t"] + params["b_hh"]
        r = jax.nn.sigmoid(gi[:, :H] + gh[:, :H])
        z = jax.nn.sigmoid(gi[:, H:2 * H] + gh[:, H:2 * H])
        n = jnp.tanh(gi[:, 2 * H:] + r * gh[:, 2 * H:])
        h = (1.0 - z) * n + z * h
    logits = h @ params["w_lin1_t"] + params["b_lin1"]
    return jax.nn.softmax(logits, axis=-1)


if __name__ == "__main__":
    # model hyper-params (small, consistent with the module's forward)
    in_channels = 4
    n_graphs = 4             # GRU sequence length 'g'
    hidden_channels = 32
    dr = 0.5                 # dropout prob (unused at inference)
    bs = 2
    nodes_per_graph = 32     # 'e' in the rearrange (hard-coded 32 in the module)
    N = bs * n_graphs * nodes_per_graph
    H = hidden_channels

    key = jax.random.PRNGKey(0)
    keys = jax.random.split(key, 16)

    # node features
    x = jax.random.normal(keys[0], (N, in_channels), dtype=jnp.float32)

    # synthetic graph: bidirectional ring inside each 32-node segment
    seg = jnp.arange(N) // nodes_per_graph
    idx = jnp.arange(N)
    nxt = seg * nodes_per_graph + (idx % nodes_per_graph + 1) % nodes_per_graph
    src = jnp.concatenate([idx, nxt])
    dst = jnp.concatenate([nxt, idx])
    edge_attr = jax.random.uniform(keys[1], (src.shape[0],), dtype=jnp.float32)
    # dense weighted adjacency: A[i, j] = weight of edge j -> i
    A = jnp.zeros((N, N), jnp.float32).at[dst, src].add(edge_attr)

    # deterministic parameter init (weights stored pre-transposed as (in, out))
    scale = 0.1
    params = {
        "w_rel1":   scale * jax.random.normal(keys[2], (in_channels, 2), jnp.float32),
        "w_root1":  scale * jax.random.normal(keys[3], (in_channels, 2), jnp.float32),
        "b1":       scale * jax.random.normal(keys[4], (1, 2), jnp.float32),
        "w_rel2":   scale * jax.random.normal(keys[5], (2, 1), jnp.float32),
        "w_root2":  scale * jax.random.normal(keys[6], (2, 1), jnp.float32),
        "b2":       scale * jax.random.normal(keys[7], (1, 1), jnp.float32),
        "w_ih_t":   scale * jax.random.normal(keys[8], (32, 3 * H), jnp.float32),
        "w_hh_t":   scale * jax.random.normal(keys[9], (H, 3 * H), jnp.float32),
        "b_ih":     scale * jax.random.normal(keys[10], (1, 3 * H), jnp.float32),
        "b_hh":     scale * jax.random.normal(keys[11], (1, 3 * H), jnp.float32),
        "w_lin1_t": scale * jax.random.normal(keys[12], (H, 4 * H), jnp.float32),
        "b_lin1":   scale * jax.random.normal(keys[13], (1, 4 * H), jnp.float32),
    }

    fwd = jax.jit(test_model_forward, static_argnums=(3, 4, 5, 6))
    out = fwd(params, A, x, bs, n_graphs, nodes_per_graph, H)
    out = jax.block_until_ready(out)

    ref = reference_forward(params, A, x, bs, n_graphs, nodes_per_graph, H)

    assert out.shape == (bs, 4 * H), out.shape
    assert bool(jnp.all(jnp.isfinite(out)))
    # exact softmax divide -> rows normalize tightly
    assert bool(jnp.allclose(jnp.sum(out, axis=-1), 1.0, atol=1e-4))
    # tolerances cover the bf16 adjacency-matmul operands (accumulation is f32)
    assert bool(jnp.allclose(out, ref, rtol=1e-2, atol=1e-4)), \
        float(jnp.max(jnp.abs(out - ref)))
    print("KERNEL_OK")
</pallas_src>

<mosaic_0001>
module attributes {stable_mosaic.version = 11 : i64} {
  func.func @fused_forward_kernel(%arg0: memref<256x256xbf16, #tpu.memory_space<vmem>>, %arg1: memref<4x256xf32, #tpu.memory_space<vmem>>, %arg2: memref<104x128xf32, #tpu.memory_space<vmem>>, %arg3: memref<2x128xf32, #tpu.memory_space<vmem>>, %arg4: memref<8x32xf32, #tpu.memory_space<vmem>>) attributes {dimension_semantics = [], scalar_prefetch = 0 : i64, scratch_operands = 1 : i64, tpu.core_type = #tpu.core_type<tc>} {
    %c0 = arith.constant 0 : index
    %c0_0 = arith.constant 0 : index
    %0 = vector.load %arg0[%c0, %c0_0] : memref<256x256xbf16, #tpu.memory_space<vmem>>, vector<256x256xbf16>
    %c0_1 = arith.constant 0 : index
    %c0_2 = arith.constant 0 : index
    %1 = vector.load %arg1[%c0_1, %c0_2] : memref<4x256xf32, #tpu.memory_space<vmem>>, vector<4x256xf32>
    %c96 = arith.constant 96 : index
    %c0_3 = arith.constant 0 : index
    %2 = vector.load %arg2[%c96, %c0_3] : memref<104x128xf32, #tpu.memory_space<vmem>>, vector<8x128xf32>
    %3 = vector.extract_strided_slice %2 {offsets = [0, 0], sizes = [1, 128], strides = [1, 1]} : vector<8x128xf32> to vector<1x128xf32>
    %4 = vector.extract_strided_slice %2 {offsets = [1, 0], sizes = [1, 128], strides = [1, 1]} : vector<8x128xf32> to vector<1x128xf32>
    %5 = vector.extract_strided_slice %2 {offsets = [2, 0], sizes = [1, 128], strides = [1, 1]} : vector<8x128xf32> to vector<1x128xf32>
    %6 = vector.extract_strided_slice %2 {offsets = [3, 0], sizes = [2, 4], strides = [1, 1]} : vector<8x128xf32> to vector<2x4xf32>
    %7 = vector.extract_strided_slice %2 {offsets = [3, 4], sizes = [2, 4], strides = [1, 1]} : vector<8x128xf32> to vector<2x4xf32>
    %8 = vector.extract_strided_slice %2 {offsets = [3, 8], sizes = [2, 1], strides = [1, 1]} : vector<8x128xf32> to vector<2x1xf32>
    %9 = vector.extract_strided_slice %2 {offsets = [5, 0], sizes = [1, 2], strides = [1, 1]} : vector<8x128xf32> to vector<1x2xf32>
    %10 = vector.extract_strided_slice %2 {offsets = [5, 2], sizes = [1, 2], strides = [1, 1]} : vector<8x128xf32> to vector<1x2xf32>
    %11 = vector.extract_strided_slice %2 {offsets = [5, 4], sizes = [1, 1], strides = [1, 1]} : vector<8x128xf32> to vector<1x1xf32>
    %12 = arith.truncf %1 : vector<4x256xf32> to vector<4x256xbf16>
    %cst = arith.constant dense<0.000000e+00> : vector<4x256xf32>
    %13 = tpu.matmul %12, %0, %cst {dimension_numbers = #tpu.dot_dimension_numbers<[1], [0], [0], [1], [0, 0, 1, 1], [], []>} : vector<4x256xbf16>, vector<256x256xbf16>, vector<4x256xf32> -> vector<4x256xf32>
    %cst_4 = arith.constant dense<0.000000e+00> : vector<2x256xf32>
    %14 = tpu.matmul %6, %13, %cst_4 {dimension_numbers = #tpu.dot_dimension_numbers<[1], [0], [0], [1], [0, 0, 1, 1], [], []>} : vector<2x4xf32>, vector<4x256xf32>, vector<2x256xf32> -> vector<2x256xf32>
    %cst_5 = arith.constant dense<0.000000e+00> : vector<2x256xf32>
    %15 = tpu.matmul %7, %1, %cst_5 {dimension_numbers = #tpu.dot_dimension_numbers<[1], [0], [0], [1], [0, 0, 1, 1], [], []>} : vector<2x4xf32>, vector<4x256xf32>, vector<2x256xf32> -> vector<2x256xf32>
    %16 = arith.addf %14, %15 : vector<2x256xf32>
    %17 = vector.broadcast %8 : vector<2x1xf32> to vector<2x256xf32>
    %18 = arith.addf %16, %17 : vector<2x256xf32>
    %cst_6 = arith.constant 0.000000e+00 : f32
    %19 = vector.broadcast %cst_6 : f32 to vector<2x256xf32>
    %20 = arith.maximumf %18, %19 : vector<2x256xf32>
    %21 = arith.truncf %20 : vector<2x256xf32> to vector<2x256xbf16>
    %cst_7 = arith.constant dense<0.000000e+00> : vector<2x256xf32>
    %22 = tpu.matmul %21, %0, %cst_7 {dimension_numbers = #tpu.dot_dimension_numbers<[1], [0], [0], [1], [0, 0, 1, 1], [], []>} : vector<2x256xbf16>, vector<256x256xbf16>, vector<2x256xf32> -> vector<2x256xf32>
    %cst_8 = arith.constant dense<0.000000e+00> : vector<1x256xf32>
    %23 = tpu.matmul %9, %22, %cst_8 {dimension_numbers = #tpu.dot_dimension_numbers<[1], [0], [0], [1], [0, 0, 1, 1], [], []>} : vector<1x2xf32>, vector<2x256xf32>, vector<1x256xf32> -> vector<1x256xf32>
    %cst_9 = arith.constant dense<0.000000e+00> : vector<1x256xf32>
    %24 = tpu.matmul %10, %20, %cst_9 {dimension_numbers = #tpu.dot_dimension_numbers<[1], [0], [0], [1], [0, 0, 1, 1], [], []>} : vector<1x2xf32>, vector<2x256xf32>, vector<1x256xf32> -> vector<1x256xf32>
    %25 = arith.addf %23, %24 : vector<1x256xf32>
    %26 = vector.broadcast %11 : vector<1x1xf32> to vector<1x256xf32>
    %27 = arith.addf %25, %26 : vector<1x256xf32>
    %cst_10 = arith.constant 0.000000e+00 : f32
    %28 = vector.broadcast %cst_10 : f32 to vector<1x256xf32>
    %29 = arith.maximumf %27, %28 : vector<1x256xf32>
    %30 = vector.extract_strided_slice %29 {offsets = [0, 0], sizes = [1, 32], strides = [1, 1]} : vector<1x256xf32> to vector<1x32xf32>
    %c0_11 = arith.constant 0 : index
    %c0_12 = arith.constant 0 : index
    %31 = vector.load %arg4[%c0_11, %c0_12] : memref<8x32xf32, #tpu.memory_space<vmem>>, vector<1x32xf32>
    tpu.vector_store %arg4[%c0_11, %c0_12], %30 {strides = array<i32>} : memref<8x32xf32, #tpu.memory_space<vmem>>, vector<1x32xf32>,
    %32 = vector.extract_strided_slice %29 {offsets = [0, 128], sizes = [1, 32], strides = [1, 1]} : vector<1x256xf32> to vector<1x32xf32>
    %c1 = arith.constant 1 : index
    %c0_13 = arith.constant 0 : index
    %33 = vector.load %arg4[%c1, %c0_13] : memref<8x32xf32, #tpu.memory_space<vmem>>, vector<1x32xf32>
    tpu.vector_store %arg4[%c1, %c0_13], %32 {strides = array<i32>} : memref<8x32xf32, #tpu.memory_space<vmem>>, vector<1x32xf32>,
    %34 = vector.extract_strided_slice %29 {offsets = [0, 32], sizes = [1, 32], strides = [1, 1]} : vector<1x256xf32> to vector<1x32xf32>
    %c2 = arith.constant 2 : index
    %c0_14 = arith.constant 0 : index
    %35 = vector.load %arg4[%c2, %c0_14] : memref<8x32xf32, #tpu.memory_space<vmem>>, vector<1x32xf32>
    tpu.vector_store %arg4[%c2, %c0_14], %34 {strides = array<i32>} : memref<8x32xf32, #tpu.memory_space<vmem>>, vector<1x32xf32>,
    %36 = vector.extract_strided_slice %29 {offsets = [0, 160], sizes = [1, 32], strides = [1, 1]} : vector<1x256xf32> to vector<1x32xf32>
    %c3 = arith.constant 3 : index
    %c0_15 = arith.constant 0 : index
    %37 = vector.load %arg4[%c3, %c0_15] : memref<8x32xf32, #tpu.memory_space<vmem>>, vector<1x32xf32>
    tpu.vector_store %arg4[%c3, %c0_15], %36 {strides = array<i32>} : memref<8x32xf32, #tpu.memory_space<vmem>>, vector<1x32xf32>,
    %38 = vector.extract_strided_slice %29 {offsets = [0, 64], sizes = [1, 32], strides = [1, 1]} : vector<1x256xf32> to vector<1x32xf32>
    %c4 = arith.constant 4 : index
    %c0_16 = arith.constant 0 : index
    %39 = vector.load %arg4[%c4, %c0_16] : memref<8x32xf32, #tpu.memory_space<vmem>>, vector<1x32xf32>
    tpu.vector_store %arg4[%c4, %c0_16], %38 {strides = array<i32>} : memref<8x32xf32, #tpu.memory_space<vmem>>, vector<1x32xf32>,
    %40 = vector.extract_strided_slice %29 {offsets = [0, 192], sizes = [1, 32], strides = [1, 1]} : vector<1x256xf32> to vector<1x32xf32>
    %c5 = arith.constant 5 : index
    %c0_17 = arith.constant 0 : index
    %41 = vector.load %arg4[%c5, %c0_17] : memref<8x32xf32, #tpu.memory_space<vmem>>, vector<1x32xf32>
    tpu.vector_store %arg4[%c5, %c0_17], %40 {strides = array<i32>} : memref<8x32xf32, #tpu.memory_space<vmem>>, vector<1x32xf32>,
    %42 = vector.extract_strided_slice %29 {offsets = [0, 96], sizes = [1, 32], strides = [1, 1]} : vector<1x256xf32> to vector<1x32xf32>
    %c6 = arith.constant 6 : index
    %c0_18 = arith.constant 0 : index
    %43 = vector.load %arg4[%c6, %c0_18] : memref<8x32xf32, #tpu.memory_space<vmem>>, vector<1x32xf32>
    tpu.vector_store %arg4[%c6, %c0_18], %42 {strides = array<i32>} : memref<8x32xf32, #tpu.memory_space<vmem>>, vector<1x32xf32>,
    %44 = vector.extract_strided_slice %29 {offsets = [0, 224], sizes = [1, 32], strides = [1, 1]} : vector<1x256xf32> to vector<1x32xf32>
    %c7 = arith.constant 7 : index
    %c0_19 = arith.constant 0 : index
    %45 = vector.load %arg4[%c7, %c0_19] : memref<8x32xf32, #tpu.memory_space<vmem>>, vector<1x32xf32>
    tpu.vector_store %arg4[%c7, %c0_19], %44 {strides = array<i32>} : memref<8x32xf32, #tpu.memory_space<vmem>>, vector<1x32xf32>,
    %c0_20 = arith.constant 0 : index
    %c0_21 = arith.constant 0 : index
    %46 = vector.load %arg4[%c0_20, %c0_21] : memref<8x32xf32, #tpu.memory_space<vmem>>, vector<8x32xf32>
    %c0_22 = arith.constant 0 : index
    %c0_23 = arith.constant 0 : index
    %47 = vector.load %arg2[%c0_22, %c0_23] : memref<104x128xf32, #tpu.memory_space<vmem>>, vector<32x128xf32>
    %c32 = arith.constant 32 : index
    %c0_24 = arith.constant 0 : index
    %48 = vector.load %arg2[%c32, %c0_24] : memref<104x128xf32, #tpu.memory_space<vmem>>, vector<32x128xf32>
    %cst_25 = arith.constant dense<0.000000e+00> : vector<8x128xf32>
    %49 = tpu.matmul %46, %47, %cst_25 {dimension_numbers = #tpu.dot_dimension_numbers<[1], [0], [0], [1], [0, 0, 1, 1], [], []>} : vector<8x32xf32>, vector<32x128xf32>, vector<8x128xf32> -> vector<8x128xf32>
    %50 = vector.broadcast %3 : vector<1x128xf32> to vector<8x128xf32>
    %51 = arith.addf %49, %50 : vector<8x128xf32>
    %cst_26 = arith.constant 0.000000e+00 : f32
    %52 = vector.broadcast %cst_26 : f32 to vector<2x32xf32>
    %53 = vector.extract_strided_slice %51 {offsets = [0, 0], sizes = [2, 128], strides = [1, 1]} : vector<8x128xf32> to vector<2x128xf32>
    %cst_27 = arith.constant dense<0.000000e+00> : vector<2x128xf32>
    %54 = tpu.matmul %52, %48, %cst_27 {dimension_numbers = #tpu.dot_dimension_numbers<[1], [0], [0], [1], [0, 0, 1, 1], [], []>} : vector<2x32xf32>, vector<32x128xf32>, vector<2x128xf32> -> vector<2x128xf32>
    %55 = vector.broadcast %4 : vector<1x128xf32> to vector<2x128xf32>
    %56 = arith.addf %54, %55 : vector<2x128xf32>
    %57 = vector.extract_strided_slice %53 {offsets = [0, 0], sizes = [2, 32], strides = [1, 1]} : vector<2x128xf32> to vector<2x32xf32>
    %58 = vector.extract_strided_slice %56 {offsets = [0, 0], sizes = [2, 32], strides = [1, 1]} : vector<2x128xf32> to vector<2x32xf32>
    %59 = arith.addf %57, %58 : vector<2x32xf32>
    %60 = arith.negf %59 : vector<2x32xf32>
    %61 = math.exp %60 : vector<2x32xf32>
    %cst_28 = arith.constant 1.000000e+00 : f32
    %62 = vector.broadcast %cst_28 : f32 to vector<2x32xf32>
    %63 = arith.addf %62, %61 : vector<2x32xf32>
    %64 = arith.divf %62, %63 : vector<2x32xf32>
    %65 = vector.extract_strided_slice %53 {offsets = [0, 32], sizes = [2, 32], strides = [1, 1]} : vector<2x128xf32> to vector<2x32xf32>
    %66 = vector.extract_strided_slice %56 {offsets = [0, 32], sizes = [2, 32], strides = [1, 1]} : vector<2x128xf32> to vector<2x32xf32>
    %67 = arith.addf %65, %66 : vector<2x32xf32>
    %68 = arith.negf %67 : vector<2x32xf32>
    %69 = math.exp %68 : vector<2x32xf32>
    %cst_29 = arith.constant 1.000000e+00 : f32
    %70 = vector.broadcast %cst_29 : f32 to vector<2x32xf32>
    %71 = arith.addf %70, %69 : vector<2x32xf32>
    %72 = arith.divf %70, %71 : vector<2x32xf32>
    %73 = vector.extract_strided_slice %53 {offsets = [0, 64], sizes = [2, 32], strides = [1, 1]} : vector<2x128xf32> to vector<2x32xf32>
    %74 = vector.extract_strided_slice %56 {offsets = [0, 64], sizes = [2, 32], strides = [1, 1]} : vector<2x128xf32> to vector<2x32xf32>
    %75 = arith.mulf %64, %74 : vector<2x32xf32>
    %76 = arith.addf %73, %75 : vector<2x32xf32>
    %77 = math.tanh %76 : vector<2x32xf32>
    %cst_30 = arith.constant 1.000000e+00 : f32
    %78 = vector.broadcast %cst_30 : f32 to vector<2x32xf32>
    %79 = arith.subf %78, %72 : vector<2x32xf32>
    %80 = arith.mulf %79, %77 : vector<2x32xf32>
    %81 = arith.mulf %72, %52 : vector<2x32xf32>
    %82 = arith.addf %80, %81 : vector<2x32xf32>
    %83 = vector.extract_strided_slice %51 {offsets = [2, 0], sizes = [2, 128], strides = [1, 1]} : vector<8x128xf32> to vector<2x128xf32>
    %cst_31 = arith.constant dense<0.000000e+00> : vector<2x128xf32>
    %84 = tpu.matmul %82, %48, %cst_31 {dimension_numbers = #tpu.dot_dimension_numbers<[1], [0], [0], [1], [0, 0, 1, 1], [], []>} : vector<2x32xf32>, vector<32x128xf32>, vector<2x128xf32> -> vector<2x128xf32>
    %85 = vector.broadcast %4 : vector<1x128xf32> to vector<2x128xf32>
    %86 = arith.addf %84, %85 : vector<2x128xf32>
    %87 = vector.extract_strided_slice %83 {offsets = [0, 0], sizes = [2, 32], strides = [1, 1]} : vector<2x128xf32> to vector<2x32xf32>
    %88 = vector.extract_strided_slice %86 {offsets = [0, 0], sizes = [2, 32], strides = [1, 1]} : vector<2x128xf32> to vector<2x32xf32>
    %89 = arith.addf %87, %88 : vector<2x32xf32>
    %90 = arith.negf %89 : vector<2x32xf32>
    %91 = math.exp %90 : vector<2x32xf32>
    %cst_32 = arith.constant 1.000000e+00 : f32
    %92 = vector.broadcast %cst_32 : f32 to vector<2x32xf32>
    %93 = arith.addf %92, %91 : vector<2x32xf32>
    %94 = arith.divf %92, %93 : vector<2x32xf32>
    %95 = vector.extract_strided_slice %83 {offsets = [0, 32], sizes = [2, 32], strides = [1, 1]} : vector<2x128xf32> to vector<2x32xf32>
    %96 = vector.extract_strided_slice %86 {offsets = [0, 32], sizes = [2, 32], strides = [1, 1]} : vector<2x128xf32> to vector<2x32xf32>
    %97 = arith.addf %95, %96 : vector<2x32xf32>
    %98 = arith.negf %97 : vector<2x32xf32>
    %99 = math.exp %98 : vector<2x32xf32>
    %cst_33 = arith.constant 1.000000e+00 : f32
    %100 = vector.broadcast %cst_33 : f32 to vector<2x32xf32>
    %101 = arith.addf %100, %99 : vector<2x32xf32>
    %102 = arith.divf %100, %101 : vector<2x32xf32>
    %103 = vector.extract_strided_slice %83 {offsets = [0, 64], sizes = [2, 32], strides = [1, 1]} : vector<2x128xf32> to vector<2x32xf32>
    %104 = vector.extract_strided_slice %86 {offsets = [0, 64], sizes = [2, 32], strides = [1, 1]} : vector<2x128xf32> to vector<2x32xf32>
    %105 = arith.mulf %94, %104 : vector<2x32xf32>
    %106 = arith.addf %103, %105 : vector<2x32xf32>
    %107 = math.tanh %106 : vector<2x32xf32>
    %cst_34 = arith.constant 1.000000e+00 : f32
    %108 = vector.broadcast %cst_34 : f32 to vector<2x32xf32>
    %109 = arith.subf %108, %102 : vector<2x32xf32>
    %110 = arith.mulf %109, %107 : vector<2x32xf32>
    %111 = arith.mulf %102, %82 : vector<2x32xf32>
    %112 = arith.addf %110, %111 : vector<2x32xf32>
    %113 = vector.extract_strided_slice %51 {offsets = [4, 0], sizes = [2, 128], strides = [1, 1]} : vector<8x128xf32> to vector<2x128xf32>
    %cst_35 = arith.constant dense<0.000000e+00> : vector<2x128xf32>
    %114 = tpu.matmul %112, %48, %cst_35 {dimension_numbers = #tpu.dot_dimension_numbers<[1], [0], [0], [1], [0, 0, 1, 1], [], []>} : vector<2x32xf32>, vector<32x128xf32>, vector<2x128xf32> -> vector<2x128xf32>
    %115 = vector.broadcast %4 : vector<1x128xf32> to vector<2x128xf32>
    %116 = arith.addf %114, %115 : vector<2x128xf32>
    %117 = vector.extract_strided_slice %113 {offsets = [0, 0], sizes = [2, 32], strides = [1, 1]} : vector<2x128xf32> to vector<2x32xf32>
    %118 = vector.extract_strided_slice %116 {offsets = [0, 0], sizes = [2, 32], strides = [1, 1]} : vector<2x128xf32> to vector<2x32xf32>
    %119 = arith.addf %117, %118 : vector<2x32xf32>
    %120 = arith.negf %119 : vector<2x32xf32>
    %121 = math.exp %120 : vector<2x32xf32>
    %cst_36 = arith.constant 1.000000e+00 : f32
    %122 = vector.broadcast %cst_36 : f32 to vector<2x32xf32>
    %123 = arith.addf %122, %121 : vector<2x32xf32>
    %124 = arith.divf %122, %123 : vector<2x32xf32>
    %125 = vector.extract_strided_slice %113 {offsets = [0, 32], sizes = [2, 32], strides = [1, 1]} : vector<2x128xf32> to vector<2x32xf32>
    %126 = vector.extract_strided_slice %116 {offsets = [0, 32], sizes = [2, 32], strides = [1, 1]} : vector<2x128xf32> to vector<2x32xf32>
    %127 = arith.addf %125, %126 : vector<2x32xf32>
    %128 = arith.negf %127 : vector<2x32xf32>
    %129 = math.exp %128 : vector<2x32xf32>
    %cst_37 = arith.constant 1.000000e+00 : f32
    %130 = vector.broadcast %cst_37 : f32 to vector<2x32xf32>
    %131 = arith.addf %130, %129 : vector<2x32xf32>
    %132 = arith.divf %130, %131 : vector<2x32xf32>
    %133 = vector.extract_strided_slice %113 {offsets = [0, 64], sizes = [2, 32], strides = [1, 1]} : vector<2x128xf32> to vector<2x32xf32>
    %134 = vector.extract_strided_slice %116 {offsets = [0, 64], sizes = [2, 32], strides = [1, 1]} : vector<2x128xf32> to vector<2x32xf32>
    %135 = arith.mulf %124, %134 : vector<2x32xf32>
    %136 = arith.addf %133, %135 : vector<2x32xf32>
    %137 = math.tanh %136 : vector<2x32xf32>
    %cst_38 = arith.constant 1.000000e+00 : f32
    %138 = vector.broadcast %cst_38 : f32 to vector<2x32xf32>
    %139 = arith.subf %138, %132 : vector<2x32xf32>
    %140 = arith.mulf %139, %137 : vector<2x32xf32>
    %141 = arith.mulf %132, %112 : vector<2x32xf32>
    %142 = arith.addf %140, %141 : vector<2x32xf32>
    %143 = vector.extract_strided_slice %51 {offsets = [6, 0], sizes = [2, 128], strides = [1, 1]} : vector<8x128xf32> to vector<2x128xf32>
    %cst_39 = arith.constant dense<0.000000e+00> : vector<2x128xf32>
    %144 = tpu.matmul %142, %48, %cst_39 {dimension_numbers = #tpu.dot_dimension_numbers<[1], [0], [0], [1], [0, 0, 1, 1], [], []>} : vector<2x32xf32>, vector<32x128xf32>, vector<2x128xf32> -> vector<2x128xf32>
    %145 = vector.broadcast %4 : vector<1x128xf32> to vector<2x128xf32>
    %146 = arith.addf %144, %145 : vector<2x128xf32>
    %147 = vector.extract_strided_slice %143 {offsets = [0, 0], sizes = [2, 32], strides = [1, 1]} : vector<2x128xf32> to vector<2x32xf32>
    %148 = vector.extract_strided_slice %146 {offsets = [0, 0], sizes = [2, 32], strides = [1, 1]} : vector<2x128xf32> to vector<2x32xf32>
    %149 = arith.addf %147, %148 : vector<2x32xf32>
    %150 = arith.negf %149 : vector<2x32xf32>
    %151 = math.exp %150 : vector<2x32xf32>
    %cst_40 = arith.constant 1.000000e+00 : f32
    %152 = vector.broadcast %cst_40 : f32 to vector<2x32xf32>
    %153 = arith.addf %152, %151 : vector<2x32xf32>
    %154 = arith.divf %152, %153 : vector<2x32xf32>
    %155 = vector.extract_strided_slice %143 {offsets = [0, 32], sizes = [2, 32], strides = [1, 1]} : vector<2x128xf32> to vector<2x32xf32>
    %156 = vector.extract_strided_slice %146 {offsets = [0, 32], sizes = [2, 32], strides = [1, 1]} : vector<2x128xf32> to vector<2x32xf32>
    %157 = arith.addf %155, %156 : vector<2x32xf32>
    %158 = arith.negf %157 : vector<2x32xf32>
    %159 = math.exp %158 : vector<2x32xf32>
    %cst_41 = arith.constant 1.000000e+00 : f32
    %160 = vector.broadcast %cst_41 : f32 to vector<2x32xf32>
    %161 = arith.addf %160, %159 : vector<2x32xf32>
    %162 = arith.divf %160, %161 : vector<2x32xf32>
    %163 = vector.extract_strided_slice %143 {offsets = [0, 64], sizes = [2, 32], strides = [1, 1]} : vector<2x128xf32> to vector<2x32xf32>
    %164 = vector.extract_strided_slice %146 {offsets = [0, 64], sizes = [2, 32], strides = [1, 1]} : vector<2x128xf32> to vector<2x32xf32>
    %165 = arith.mulf %154, %164 : vector<2x32xf32>
    %166 = arith.addf %163, %165 : vector<2x32xf32>
    %167 = math.tanh %166 : vector<2x32xf32>
    %cst_42 = arith.constant 1.000000e+00 : f32
    %168 = vector.broadcast %cst_42 : f32 to vector<2x32xf32>
    %169 = arith.subf %168, %162 : vector<2x32xf32>
    %170 = arith.mulf %169, %167 : vector<2x32xf32>
    %171 = arith.mulf %162, %142 : vector<2x32xf32>
    %172 = arith.addf %170, %171 : vector<2x32xf32>
    %c64 = arith.constant 64 : index
    %c0_43 = arith.constant 0 : index
    %173 = vector.load %arg2[%c64, %c0_43] : memref<104x128xf32, #tpu.memory_space<vmem>>, vector<32x128xf32>
    %cst_44 = arith.constant dense<0.000000e+00> : vector<2x128xf32>
    %174 = tpu.matmul %172, %173, %cst_44 {dimension_numbers = #tpu.dot_dimension_numbers<[1], [0], [0], [1], [0, 0, 1, 1], [], []>} : vector<2x32xf32>, vector<32x128xf32>, vector<2x128xf32> -> vector<2x128xf32>
    %175 = vector.broadcast %5 : vector<1x128xf32> to vector<2x128xf32>
    %176 = arith.addf %174, %175 : vector<2x128xf32>
    %cst_45 = arith.constant dense<0xFF800000> : vector<2xf32>
    %177 = vector.multi_reduction <maximumf>, %176, %cst_45 [1] : vector<2x128xf32> to vector<2xf32>
    %178 = vector.shape_cast %177 : vector<2xf32> to vector<2x1xf32>
    %179 = vector.broadcast %178 : vector<2x1xf32> to vector<2x128xf32>
    %180 = arith.subf %176, %179 : vector<2x128xf32>
    %181 = math.exp %180 : vector<2x128xf32>
    %cst_46 = arith.constant dense<0.000000e+00> : vector<2xf32>
    %182 = vector.multi_reduction <add>, %181, %cst_46 [1] : vector<2x128xf32> to vector<2xf32>
    %183 = vector.shape_cast %182 : vector<2xf32> to vector<2x1xf32>
    %184 = vector.broadcast %183 : vector<2x1xf32> to vector<2x128xf32>
    %185 = arith.divf %181, %184 : vector<2x128xf32>
    %c0_47 = arith.constant 0 : index
    %c0_48 = arith.constant 0 : index
    %186 = vector.load %arg3[%c0_47, %c0_48] : memref<2x128xf32, #tpu.memory_space<vmem>>, vector<2x128xf32>
    tpu.vector_store %arg3[%c0_47, %c0_48], %185 {strides = array<i32>} : memref<2x128xf32, #tpu.memory_space<vmem>>, vector<2x128xf32>,
    return
  }
}

</mosaic_0001>

<llo_original>
// kernel: test_model_forward.1
$region0: #{test_model_forward.1}
  #allocation0 [shape = 'u32[]', space=smem, size = 0x4, offset = 0x4, fixed_abs, tag = 'smem constant byte address 0x4 - core index']
  #allocation1 [shape = 'u32[144,128]{1,0:T(1,128)}', space=vmem, size = 0x12000, scoped, tag = 'internal scratch']
  #allocation2 [shape = 'f32[8,32]{1,0:T(8,128)}', space=vmem, size = 0x1000, scoped, tag = 'scratch operand']
  %s0 = inlined_call_operand.vmem [shape: bf16[256,256], index: 0, kind: input, shape index: {}]
  %s1 = inlined_call_operand.vmem [shape: f32[4,256], index: 1, kind: input, shape index: {}]
  %s2 = inlined_call_operand.vmem [shape: f32[104,128], index: 2, kind: input, shape index: {}]
  %s3 = inlined_call_operand.hbm [shape: f32[2,128], index: 3, kind: output, shape index: {}]
  %s4 = sld [smem:[#allocation0]]
  $region22: #{test_model_forward.1} parent=0
    _
  %s6 = ssub.s32 1, %s4
  %s7 = scalar_select 0, %s6, %s4
  $region1: #{test_model_forward.1} parent=0
    #allocation3 [shape = 'u8[1024]{0}', space=vmem, size = 0x400, scoped, tag = 'output window, operand 0, single buffered']
    #allocation4 [shape = 's32[1]{0}', space=sflag, size = 0x4, scoped, tag = 'scoped memory for test_model_forward.1']
    %8 = vsyncpa [#allocation4], 0
    // Predicated region
    $region2: #{test_model_forward.1} parent=1 // pred_check
      _
    $region3: #{test_model_forward.1} parent=1 // pred_check_branch
      %10 = sbr.rel (0) target = $region5
    $region4: #{test_model_forward.1} parent=1 // pred_region
      _
    $region5: #{test_model_forward.1} parent=1 // pred_fallthru
      _
    // Predicated region
    $region6: #{test_model_forward.1} parent=1 // pred_check
      _
    $region7: #{test_model_forward.1} parent=1 // pred_check_branch
      %12 = sbr.rel (0) target = $region9
    $region8: #{test_model_forward.1} parent=1 // pred_region
      _
    $region9: #{test_model_forward.1} parent=1 // pred_fallthru
      _
    // Predicated region
    $region10: #{test_model_forward.1} parent=1 // pred_check
      _
    $region11: #{test_model_forward.1} parent=1 // pred_check_branch
      %14 = sbr.rel (0) target = $region13
    $region12: #{test_model_forward.1} parent=1 // pred_region
      _
    $region13: #{test_model_forward.1} parent=1 // pred_fallthru
      _
    %v15 = vld [vmem:[%s0] sm:$0xff]
    %v16 = vld [vmem:[%s0 + $0x8] sm:$0xff]
    %v17 = vld [vmem:[%s0 + $0x10] sm:$0xff]
    %v18 = vld [vmem:[%s0 + $0x18] sm:$0xff]
    %v19 = vld [vmem:[%s0 + $0x20] sm:$0xff]
    %v20 = vld [vmem:[%s0 + $0x28] sm:$0xff]
    %v21 = vld [vmem:[%s0 + $0x30] sm:$0xff]
    %v22 = vld [vmem:[%s0 + $0x38] sm:$0xff]
    %v23 = vld [vmem:[%s0 + $0x40] sm:$0xff]
    %v24 = vld [vmem:[%s0 + $0x48] sm:$0xff]
    %v25 = vld [vmem:[%s0 + $0x50] sm:$0xff]
    %v26 = vld [vmem:[%s0 + $0x58] sm:$0xff]
    %v27 = vld [vmem:[%s0 + $0x60] sm:$0xff]
    %v28 = vld [vmem:[%s0 + $0x68] sm:$0xff]
    %v29 = vld [vmem:[%s0 + $0x70] sm:$0xff]
    %v30 = vld [vmem:[%s0 + $0x78] sm:$0xff]
    %v31 = vld [vmem:[%s0 + $0x80] sm:$0xff]
    %v32 = vld [vmem:[%s0 + $0x88] sm:$0xff]
    %v33 = vld [vmem:[%s0 + $0x90] sm:$0xff]
    %v34 = vld [vmem:[%s0 + $0x98] sm:$0xff]
    %v35 = vld [vmem:[%s0 + $0xa0] sm:$0xff]
    %v36 = vld [vmem:[%s0 + $0xa8] sm:$0xff]
    %v37 = vld [vmem:[%s0 + $0xb0] sm:$0xff]
    %v38 = vld [vmem:[%s0 + $0xb8] sm:$0xff]
    %v39 = vld [vmem:[%s0 + $0xc0] sm:$0xff]
    %v40 = vld [vmem:[%s0 + $0xc8] sm:$0xff]
    %v41 = vld [vmem:[%s0 + $0xd0] sm:$0xff]
    %v42 = vld [vmem:[%s0 + $0xd8] sm:$0xff]
    %v43 = vld [vmem:[%s0 + $0xe0] sm:$0xff]
    %v44 = vld [vmem:[%s0 + $0xe8] sm:$0xff]
    %v45 = vld [vmem:[%s0 + $0xf0] sm:$0xff]
    %v46 = vld [vmem:[%s0 + $0xf8] sm:$0xff]
    %v47 = vld [vmem:[%s1] sm:$0xff]
    %v48 = vld [vmem:[%s2 + $0x60] sm:$0xff]
    %v50 = vcombine.high %v47, %v47
    %v52 = vpack.c.bf16 %v47, %v47
    %v53 = vpack.c.bf16 %v50, %v50
    %v86 = vunpack.c.l.b16 %v15
    %v87 = vunpack.c.h.b16 %v15
    %v88 = vunpack.c.l.b16 %v16
    %v89 = vunpack.c.h.b16 %v16
    %v90 = vunpack.c.l.b16 %v17
    %v91 = vunpack.c.h.b16 %v17
    %v92 = vunpack.c.l.b16 %v18
    %v93 = vunpack.c.h.b16 %v18
    %v94 = vunpack.c.l.b16 %v19
    %v95 = vunpack.c.h.b16 %v19
    %v96 = vunpack.c.l.b16 %v20
    %v97 = vunpack.c.h.b16 %v20
    %v98 = vunpack.c.l.b16 %v21
    %v99 = vunpack.c.h.b16 %v21
    %v100 = vunpack.c.l.b16 %v22
    %v101 = vunpack.c.h.b16 %v22
    %v102 = vunpack.c.l.b16 %v23
    %v103 = vunpack.c.h.b16 %v23
    %v104 = vunpack.c.l.b16 %v24
    %v105 = vunpack.c.h.b16 %v24
    %v106 = vunpack.c.l.b16 %v25
    %v107 = vunpack.c.h.b16 %v25
    %v108 = vunpack.c.l.b16 %v26
    %v109 = vunpack.c.h.b16 %v26
    %v110 = vunpack.c.l.b16 %v27
    %v111 = vunpack.c.h.b16 %v27
    %v112 = vunpack.c.l.b16 %v28
    %v113 = vunpack.c.h.b16 %v28
    %v114 = vunpack.c.l.b16 %v29
    %v115 = vunpack.c.h.b16 %v29
    %v116 = vunpack.c.l.b16 %v30
    %v117 = vunpack.c.h.b16 %v30
    %v118 = vunpack.c.l.b16 %v31
    %v119 = vunpack.c.h.b16 %v31
    %v120 = vunpack.c.l.b16 %v32
    %v121 = vunpack.c.h.b16 %v32
    %v122 = vunpack.c.l.b16 %v33
    %v123 = vunpack.c.h.b16 %v33
    %v124 = vunpack.c.l.b16 %v34
    %v125 = vunpack.c.h.b16 %v34
    %v126 = vunpack.c.l.b16 %v35
    %v127 = vunpack.c.h.b16 %v35
    %v128 = vunpack.c.l.b16 %v36
    %v129 = vunpack.c.h.b16 %v36
    %v130 = vunpack.c.l.b16 %v37
    %v131 = vunpack.c.h.b16 %v37
    %v132 = vunpack.c.l.b16 %v38
    %v133 = vunpack.c.h.b16 %v38
    %v134 = vunpack.c.l.b16 %v39
    %v135 = vunpack.c.h.b16 %v39
    %v136 = vunpack.c.l.b16 %v40
    %v137 = vunpack.c.h.b16 %v40
    %v138 = vunpack.c.l.b16 %v41
    %v139 = vunpack.c.h.b16 %v41
    %v140 = vunpack.c.l.b16 %v42
    %v141 = vunpack.c.h.b16 %v42
    %v142 = vunpack.c.l.b16 %v43
    %v143 = vunpack.c.h.b16 %v43
    %v144 = vunpack.c.l.b16 %v44
    %v145 = vunpack.c.h.b16 %v44
    %v146 = vunpack.c.l.b16 %v45
    %v147 = vunpack.c.h.b16 %v45
    %v148 = vunpack.c.l.b16 %v46
    %v149 = vunpack.c.h.b16 %v46
    %v150 = vpack.c.b16 %v88, %v86
    %v151 = vpack.c.b16 %v89, %v87
    %v152 = vpack.c.b16 %v92, %v90
    %v153 = vpack.c.b16 %v93, %v91
    %v154 = vpack.c.b16 %v96, %v94
    %v155 = vpack.c.b16 %v97, %v95
    %v156 = vpack.c.b16 %v100, %v98
    %v157 = vpack.c.b16 %v101, %v99
    %v158 = vpack.c.b16 %v104, %v102
    %v159 = vpack.c.b16 %v105, %v103
    %v160 = vpack.c.b16 %v108, %v106
    %v161 = vpack.c.b16 %v109, %v107
    %v162 = vpack.c.b16 %v112, %v110
    %v163 = vpack.c.b16 %v113, %v111
    %v164 = vpack.c.b16 %v116, %v114
    %v165 = vpack.c.b16 %v117, %v115
    %v166 = vpack.c.b16 %v120, %v118
    %v167 = vpack.c.b16 %v121, %v119
    %v168 = vpack.c.b16 %v124, %v122
    %v169 = vpack.c.b16 %v125, %v123
    %v170 = vpack.c.b16 %v128, %v126
    %v171 = vpack.c.b16 %v129, %v127
    %v172 = vpack.c.b16 %v132, %v130
    %v173 = vpack.c.b16 %v133, %v131
    %v174 = vpack.c.b16 %v136, %v134
    %v175 = vpack.c.b16 %v137, %v135
    %v176 = vpack.c.b16 %v140, %v138
    %v177 = vpack.c.b16 %v141, %v139
    %v178 = vpack.c.b16 %v144, %v142
    %v179 = vpack.c.b16 %v145, %v143
    %v180 = vpack.c.b16 %v148, %v146
    %v181 = vpack.c.b16 %v149, %v147
    %214 = vmatprep.subr.bf16.mxu0 %v151
    %215 = vmatpush1.bf16.msra.mxu0 %v150
    %216 = vmatprep.subr.bf16.mxu0 %v153
    %217 = vmatpush1.bf16.msra.mxu0 %v152
    %218 = vmatprep.subr.bf16.mxu0 %v155
    %219 = vmatpush1.bf16.msra.mxu0 %v154
    %220 = vmatprep.subr.bf16.mxu0 %v157
    %221 = vmatpush1.bf16.msra.mxu0 %v156
    %222 = vmatprep.subr.bf16.mxu0 %v159
    %223 = vmatpush1.bf16.msra.mxu0 %v158
    %224 = vmatprep.subr.bf16.mxu0 %v161
    %225 = vmatpush1.bf16.msra.mxu0 %v160
    %226 = vmatprep.subr.bf16.mxu0 %v163
    %227 = vmatpush1.bf16.msra.mxu0 %v162
    %228 = vmatprep.subr.bf16.mxu0 %v165
    %229 = vmatpush1.bf16.msra.mxu0 %v164
    %230 = vmatprep.subr.bf16.mxu0 %v167
    %231 = vmatpush1.bf16.msra.mxu0 %v166
    %232 = vmatprep.subr.bf16.mxu0 %v169
    %233 = vmatpush1.bf16.msra.mxu0 %v168
    %234 = vmatprep.subr.bf16.mxu0 %v171
    %235 = vmatpush1.bf16.msra.mxu0 %v170
    %236 = vmatprep.subr.bf16.mxu0 %v173
    %237 = vmatpush1.bf16.msra.mxu0 %v172
    %238 = vmatprep.subr.bf16.mxu0 %v175
    %239 = vmatpush1.bf16.msra.mxu0 %v174
    %240 = vmatprep.subr.bf16.mxu0 %v177
    %241 = vmatpush1.bf16.msra.mxu0 %v176
    %242 = vmatprep.subr.bf16.mxu0 %v179
    %243 = vmatpush1.bf16.msra.mxu0 %v178
    %244 = vmatprep.subr.bf16.mxu0 %v181
    %245 = vmatpush1.bf16.msra.mxu0 %v180
    %246 = vmatprep.mubr.bf16.mxu0 %v53
    %247 = vmatmul.mubr.bf16.gmra.mrb[0].mxu0 %v52
    %v248 = vpop.f32.mrb[0].mxu0
    %v249 = vadd.f32 0.0, %v248
    %v250 = vpop.f32.mrb[0].mxu0
    %v251 = vadd.f32 0.0, %v250
    %v252 = vpop.f32.mrb[0].mxu0
    %v253 = vpop.f32.mrb[0].mxu0
    %254 = vdwg.mxu0
    %v256 = vrot.slane %v48, 3
    %257 = vrot.lane.b32.xlu0 %v256, 124
    %v258 = vpop.permute.xlu0 %257
    %vm259 = vcmask 31744
    %v260 = vsel %vm259, %v258, 0
    %vm262 = vcmask 1043456
    %v263 = vsel %vm262, %v47, 0
    %v265 = vsel %vm262, %v50, 0
    %267 = vmatprep.subr.mxu0 %v265
    %268 = vmatpush1.msra.mxu0 %v263
    %269 = vmatprep.subr.mxu0 0.0
    %270 = vmatpush1.msra.mxu0 0.0
    %271 = vmatprep.subr.mxu0 0.0
    %272 = vmatpush1.msra.mxu0 0.0
    %273 = vmatprep.subr.mxu0 0.0
    %274 = vmatpush1.msra.mxu0 0.0
    %275 = vmatprep.subr.mxu0 0.0
    %276 = vmatpush1.msra.mxu0 0.0
    %277 = vmatprep.subr.mxu0 0.0
    %278 = vmatpush1.msra.mxu0 0.0
    %279 = vmatprep.subr.mxu0 0.0
    %280 = vmatpush1.msra.mxu0 0.0
    %281 = vmatprep.subr.mxu0 0.0
    %282 = vmatpush1.msra.mxu0 0.0
    %283 = vmatprep.subr.mxu0 0.0
    %284 = vmatpush1.msra.mxu0 0.0
    %285 = vmatprep.subr.mxu0 0.0
    %286 = vmatpush1.msra.mxu0 0.0
    %287 = vmatprep.subr.mxu0 0.0
    %288 = vmatpush1.msra.mxu0 0.0
    %289 = vmatprep.subr.mxu0 0.0
    %290 = vmatpush1.msra.mxu0 0.0
    %291 = vmatprep.subr.mxu0 0.0
    %292 = vmatpush1.msra.mxu0 0.0
    %293 = vmatprep.subr.mxu0 0.0
    %294 = vmatpush1.msra.mxu0 0.0
    %295 = vmatprep.subr.mxu0 0.0
    %296 = vmatpush1.msra.mxu0 0.0
    %297 = vmatprep.subr.mxu0 0.0
    %298 = vmatpush1.msra.mxu0 0.0
    %299 = vmatprep.subr.mxu0 0.0
    %300 = vmatpush1.msra.mxu0 0.0
    %301 = vmatprep.subr.mxu0 0.0
    %302 = vmatpush1.msra.mxu0 0.0
    %303 = vmatprep.subr.mxu0 0.0
    %304 = vmatpush1.msra.mxu0 0.0
    %305 = vmatprep.subr.mxu0 0.0
    %306 = vmatpush1.msra.mxu0 0.0
    %307 = vmatprep.subr.mxu0 0.0
    %308 = vmatpush1.msra.mxu0 0.0
    %309 = vmatprep.subr.mxu0 0.0
    %310 = vmatpush1.msra.mxu0 0.0
    %311 = vmatprep.subr.mxu0 0.0
    %312 = vmatpush1.msra.mxu0 0.0
    %313 = vmatprep.subr.mxu0 0.0
    %314 = vmatpush1.msra.mxu0 0.0
    %315 = vmatprep.subr.mxu0 0.0
    %316 = vmatpush1.msra.mxu0 0.0
    %317 = vmatprep.subr.mxu0 0.0
    %318 = vmatpush1.msra.mxu0 0.0
    %319 = vmatprep.subr.mxu0 0.0
    %320 = vmatpush1.msra.mxu0 0.0
    %321 = vmatprep.subr.mxu0 0.0
    %322 = vmatpush1.msra.mxu0 0.0
    %323 = vmatprep.subr.mxu0 0.0
    %324 = vmatpush1.msra.mxu0 0.0
    %325 = vmatprep.subr.mxu0 0.0
    %326 = vmatpush1.msra.mxu0 0.0
    %327 = vmatprep.subr.mxu0 0.0
    %328 = vmatpush1.msra.mxu0 0.0
    %329 = vmatprep.subr.mxu0 0.0
    %330 = vmatpush1.msra.mxu0 0.0
    %331 = vmatprep.mubr.f32.mxu0 0.0
    %332 = vmatmul.mubr.f32.gmra.mrb[0].mxu0 %v260
    %v333 = vpop.f32.mrb[0].mxu0
    %v334 = vadd.f32 0.0, %v333
    %v335 = vpop.f32.mrb[0].mxu0
    %v336 = vadd.f32 0.0, %v335
    %337 = vdwg.mxu0
    %v338 = vsel %vm259, %v256, 0
    %v341 = vsel %vm262, %v249, 0
    %v344 = vsel %vm262, %v251, 0
    %346 = vmatprep.subr.mxu0 %v344
    %347 = vmatpush1.msra.mxu0 %v341
    %348 = vmatprep.subr.mxu0 0.0
    %349 = vmatpush1.msra.mxu0 0.0
    %350 = vmatprep.subr.mxu0 0.0
    %351 = vmatpush1.msra.mxu0 0.0
    %352 = vmatprep.subr.mxu0 0.0
    %353 = vmatpush1.msra.mxu0 0.0
    %354 = vmatprep.subr.mxu0 0.0
    %355 = vmatpush1.msra.mxu0 0.0
    %356 = vmatprep.subr.mxu0 0.0
    %357 = vmatpush1.msra.mxu0 0.0
    %358 = vmatprep.subr.mxu0 0.0
    %359 = vmatpush1.msra.mxu0 0.0
    %360 = vmatprep.subr.mxu0 0.0
    %361 = vmatpush1.msra.mxu0 0.0
    %362 = vmatprep.subr.mxu0 0.0
    %363 = vmatpush1.msra.mxu0 0.0
    %364 = vmatprep.subr.mxu0 0.0
    %365 = vmatpush1.msra.mxu0 0.0
    %366 = vmatprep.subr.mxu0 0.0
    %367 = vmatpush1.msra.mxu0 0.0
    %368 = vmatprep.subr.mxu0 0.0
    %369 = vmatpush1.msra.mxu0 0.0
    %370 = vmatprep.subr.mxu0 0.0
    %371 = vmatpush1.msra.mxu0 0.0
    %372 = vmatprep.subr.mxu0 0.0
    %373 = vmatpush1.msra.mxu0 0.0
    %374 = vmatprep.subr.mxu0 0.0
    %375 = vmatpush1.msra.mxu0 0.0
    %376 = vmatprep.subr.mxu0 0.0
    %377 = vmatpush1.msra.mxu0 0.0
    %378 = vmatprep.subr.mxu0 0.0
    %379 = vmatpush1.msra.mxu0 0.0
    %380 = vmatprep.subr.mxu0 0.0
    %381 = vmatpush1.msra.mxu0 0.0
    %382 = vmatprep.subr.mxu0 0.0
    %383 = vmatpush1.msra.mxu0 0.0
    %384 = vmatprep.subr.mxu0 0.0
    %385 = vmatpush1.msra.mxu0 0.0
    %386 = vmatprep.subr.mxu0 0.0
    %387 = vmatpush1.msra.mxu0 0.0
    %388 = vmatprep.subr.mxu0 0.0
    %389 = vmatpush1.msra.mxu0 0.0
    %390 = vmatprep.subr.mxu0 0.0
    %391 = vmatpush1.msra.mxu0 0.0
    %392 = vmatprep.subr.mxu0 0.0
    %393 = vmatpush1.msra.mxu0 0.0
    %394 = vmatprep.subr.mxu0 0.0
    %395 = vmatpush1.msra.mxu0 0.0
    %396 = vmatprep.subr.mxu0 0.0
    %397 = vmatpush1.msra.mxu0 0.0
    %398 = vmatprep.subr.mxu0 0.0
    %399 = vmatpush1.msra.mxu0 0.0
    %400 = vmatprep.subr.mxu0 0.0
    %401 = vmatpush1.msra.mxu0 0.0
    %402 = vmatprep.subr.mxu0 0.0
    %403 = vmatpush1.msra.mxu0 0.0
    %404 = vmatprep.subr.mxu0 0.0
    %405 = vmatpush1.msra.mxu0 0.0
    %406 = vmatprep.subr.mxu0 0.0
    %407 = vmatpush1.msra.mxu0 0.0
    %408 = vmatprep.subr.mxu0 0.0
    %409 = vmatpush1.msra.mxu0 0.0
    %410 = vmatprep.mubr.f32.mxu0 0.0
    %411 = vmatmul.mubr.f32.gmra.mrb[0].mxu0 %v338
    %v412 = vpop.f32.mrb[0].mxu0
    %v413 = vadd.f32 %v334, %v412
    %v414 = vpop.f32.mrb[0].mxu0
    %v415 = vadd.f32 %v336, %v414
    %416 = vdwg.mxu0
    %417 = vset.pattern.permute.xlu0 8
    %418 = vperm.xlu0 %417, %v48
    %v419 = vpop.permute.xlu0 %418
    %v420 = vrot.slane %v419, 3
    %v422 = vadd.f32 %v413, %v420
    %v423 = vadd.f32 %v415, %v420
    %v424 = vmax.f32 %v422, 0.0
    %v425 = vmax.f32 %v423, 0.0
    %v426 = vpack.c.bf16 %v424, %v424
    %v427 = vpack.c.bf16 %v425, %v425
    %428 = vmatprep.subr.bf16.mxu0 %v151
    %429 = vmatpush1.bf16.msra.mxu0 %v150
    %430 = vmatprep.subr.bf16.mxu0 %v153
    %431 = vmatpush1.bf16.msra.mxu0 %v152
    %432 = vmatprep.subr.bf16.mxu0 %v155
    %433 = vmatpush1.bf16.msra.mxu0 %v154
    %434 = vmatprep.subr.bf16.mxu0 %v157
    %435 = vmatpush1.bf16.msra.mxu0 %v156
    %436 = vmatprep.subr.bf16.mxu0 %v159
    %437 = vmatpush1.bf16.msra.mxu0 %v158
    %438 = vmatprep.subr.bf16.mxu0 %v161
    %439 = vmatpush1.bf16.msra.mxu0 %v160
    %440 = vmatprep.subr.bf16.mxu0 %v163
    %441 = vmatpush1.bf16.msra.mxu0 %v162
    %442 = vmatprep.subr.bf16.mxu0 %v165
    %443 = vmatpush1.bf16.msra.mxu0 %v164
    %444 = vmatprep.subr.bf16.mxu0 %v167
    %445 = vmatpush1.bf16.msra.mxu0 %v166
    %446 = vmatprep.subr.bf16.mxu0 %v169
    %447 = vmatpush1.bf16.msra.mxu0 %v168
    %448 = vmatprep.subr.bf16.mxu0 %v171
    %449 = vmatpush1.bf16.msra.mxu0 %v170
    %450 = vmatprep.subr.bf16.mxu0 %v173
    %451 = vmatpush1.bf16.msra.mxu0 %v172
    %452 = vmatprep.subr.bf16.mxu0 %v175
    %453 = vmatpush1.bf16.msra.mxu0 %v174
    %454 = vmatprep.subr.bf16.mxu0 %v177
    %455 = vmatpush1.bf16.msra.mxu0 %v176
    %456 = vmatprep.subr.bf16.mxu0 %v179
    %457 = vmatpush1.bf16.msra.mxu0 %v178
    %458 = vmatprep.subr.bf16.mxu0 %v181
    %459 = vmatpush1.bf16.msra.mxu0 %v180
    %460 = vmatprep.mubr.bf16.mxu0 %v427
    %461 = vmatmul.mubr.bf16.gmra.mrb[0].mxu0 %v426
    %v462 = vpop.f32.mrb[0].mxu0
    %v463 = vadd.f32 0.0, %v462
    %v464 = vpop.f32.mrb[0].mxu0
    %v465 = vadd.f32 0.0, %v464
    %v466 = vpop.f32.mrb[0].mxu0
    %v467 = vpop.f32.mrb[0].mxu0
    %468 = vdwg.mxu0
    %v469 = vrot.slane %v48, 5
    %470 = vrot.lane.b32.xlu0 %v469, 126
    %v471 = vpop.permute.xlu0 %470
    %vm472 = vcmask 15360
    %v473 = vsel %vm472, %v471, 0
    %vm475 = vcmask 1041408
    %v477 = vsel %vm475, %v424, 0
    %v480 = vsel %vm475, %v425, 0
    %482 = vmatprep.subr.mxu0 %v480
    %483 = vmatpush1.msra.mxu0 %v477
    %484 = vmatprep.subr.mxu0 0.0
    %485 = vmatpush1.msra.mxu0 0.0
    %486 = vmatprep.subr.mxu0 0.0
    %487 = vmatpush1.msra.mxu0 0.0
    %488 = vmatprep.subr.mxu0 0.0
    %489 = vmatpush1.msra.mxu0 0.0
    %490 = vmatprep.subr.mxu0 0.0
    %491 = vmatpush1.msra.mxu0 0.0
    %492 = vmatprep.subr.mxu0 0.0
    %493 = vmatpush1.msra.mxu0 0.0
    %494 = vmatprep.subr.mxu0 0.0
    %495 = vmatpush1.msra.mxu0 0.0
    %496 = vmatprep.subr.mxu0 0.0
    %497 = vmatpush1.msra.mxu0 0.0
    %498 = vmatprep.subr.mxu0 0.0
    %499 = vmatpush1.msra.mxu0 0.0
    %500 = vmatprep.subr.mxu0 0.0
    %501 = vmatpush1.msra.mxu0 0.0
    %502 = vmatprep.subr.mxu0 0.0
    %503 = vmatpush1.msra.mxu0 0.0
    %504 = vmatprep.subr.mxu0 0.0
    %505 = vmatpush1.msra.mxu0 0.0
    %506 = vmatprep.subr.mxu0 0.0
    %507 = vmatpush1.msra.mxu0 0.0
    %508 = vmatprep.subr.mxu0 0.0
    %509 = vmatpush1.msra.mxu0 0.0
    %510 = vmatprep.subr.mxu0 0.0
    %511 = vmatpush1.msra.mxu0 0.0
    %512 = vmatprep.subr.mxu0 0.0
    %513 = vmatpush1.msra.mxu0 0.0
    %514 = vmatprep.subr.mxu0 0.0
    %515 = vmatpush1.msra.mxu0 0.0
    %516 = vmatprep.subr.mxu0 0.0
    %517 = vmatpush1.msra.mxu0 0.0
    %518 = vmatprep.subr.mxu0 0.0
    %519 = vmatpush1.msra.mxu0 0.0
    %520 = vmatprep.subr.mxu0 0.0
    %521 = vmatpush1.msra.mxu0 0.0
    %522 = vmatprep.subr.mxu0 0.0
    %523 = vmatpush1.msra.mxu0 0.0
    %524 = vmatprep.subr.mxu0 0.0
    %525 = vmatpush1.msra.mxu0 0.0
    %526 = vmatprep.subr.mxu0 0.0
    %527 = vmatpush1.msra.mxu0 0.0
    %528 = vmatprep.subr.mxu0 0.0
    %529 = vmatpush1.msra.mxu0 0.0
    %530 = vmatprep.subr.mxu0 0.0
    %531 = vmatpush1.msra.mxu0 0.0
    %532 = vmatprep.subr.mxu0 0.0
    %533 = vmatpush1.msra.mxu0 0.0
    %534 = vmatprep.subr.mxu0 0.0
    %535 = vmatpush1.msra.mxu0 0.0
    %536 = vmatprep.subr.mxu0 0.0
    %537 = vmatpush1.msra.mxu0 0.0
    %538 = vmatprep.subr.mxu0 0.0
    %539 = vmatpush1.msra.mxu0 0.0
    %540 = vmatprep.subr.mxu0 0.0
    %541 = vmatpush1.msra.mxu0 0.0
    %542 = vmatprep.subr.mxu0 0.0
    %543 = vmatpush1.msra.mxu0 0.0
    %544 = vmatprep.subr.mxu0 0.0
    %545 = vmatpush1.msra.mxu0 0.0
    %546 = vmatprep.mubr.f32.mxu0 0.0
    %547 = vmatmul.mubr.f32.gmra.mrb[0].mxu0 %v473
    %v548 = vpop.f32.mrb[0].mxu0
    %v549 = vadd.f32 0.0, %v548
    %v550 = vpop.f32.mrb[0].mxu0
    %v551 = vadd.f32 0.0, %v550
    %552 = vdwg.mxu0
    %v553 = vsel %vm472, %v469, 0
    %v556 = vsel %vm475, %v463, 0
    %v559 = vsel %vm475, %v465, 0
    %561 = vmatprep.subr.mxu0 %v559
    %562 = vmatpush1.msra.mxu0 %v556
    %563 = vmatprep.subr.mxu0 0.0
    %564 = vmatpush1.msra.mxu0 0.0
    %565 = vmatprep.subr.mxu0 0.0
    %566 = vmatpush1.msra.mxu0 0.0
    %567 = vmatprep.subr.mxu0 0.0
    %568 = vmatpush1.msra.mxu0 0.0
    %569 = vmatprep.subr.mxu0 0.0
    %570 = vmatpush1.msra.mxu0 0.0
    %571 = vmatprep.subr.mxu0 0.0
    %572 = vmatpush1.msra.mxu0 0.0
    %573 = vmatprep.subr.mxu0 0.0
    %574 = vmatpush1.msra.mxu0 0.0
    %575 = vmatprep.subr.mxu0 0.0
    %576 = vmatpush1.msra.mxu0 0.0
    %577 = vmatprep.subr.mxu0 0.0
    %578 = vmatpush1.msra.mxu0 0.0
    %579 = vmatprep.subr.mxu0 0.0
    %580 = vmatpush1.msra.mxu0 0.0
    %581 = vmatprep.subr.mxu0 0.0
    %582 = vmatpush1.msra.mxu0 0.0
    %583 = vmatprep.subr.mxu0 0.0
    %584 = vmatpush1.msra.mxu0 0.0
    %585 = vmatprep.subr.mxu0 0.0
    %586 = vmatpush1.msra.mxu0 0.0
    %587 = vmatprep.subr.mxu0 0.0
    %588 = vmatpush1.msra.mxu0 0.0
    %589 = vmatprep.subr.mxu0 0.0
    %590 = vmatpush1.msra.mxu0 0.0
    %591 = vmatprep.subr.mxu0 0.0
    %592 = vmatpush1.msra.mxu0 0.0
    %593 = vmatprep.subr.mxu0 0.0
    %594 = vmatpush1.msra.mxu0 0.0
    %595 = vmatprep.subr.mxu0 0.0
    %596 = vmatpush1.msra.mxu0 0.0
    %597 = vmatprep.subr.mxu0 0.0
    %598 = vmatpush1.msra.mxu0 0.0
    %599 = vmatprep.subr.mxu0 0.0
    %600 = vmatpush1.msra.mxu0 0.0
    %601 = vmatprep.subr.mxu0 0.0
    %602 = vmatpush1.msra.mxu0 0.0
    %603 = vmatprep.subr.mxu0 0.0
    %604 = vmatpush1.msra.mxu0 0.0
    %605 = vmatprep.subr.mxu0 0.0
    %606 = vmatpush1.msra.mxu0 0.0
    %607 = vmatprep.subr.mxu0 0.0
    %608 = vmatpush1.msra.mxu0 0.0
    %609 = vmatprep.subr.mxu0 0.0
    %610 = vmatpush1.msra.mxu0 0.0
    %611 = vmatprep.subr.mxu0 0.0
    %612 = vmatpush1.msra.mxu0 0.0
    %613 = vmatprep.subr.mxu0 0.0
    %614 = vmatpush1.msra.mxu0 0.0
    %615 = vmatprep.subr.mxu0 0.0
    %616 = vmatpush1.msra.mxu0 0.0
    %617 = vmatprep.subr.mxu0 0.0
    %618 = vmatpush1.msra.mxu0 0.0
    %619 = vmatprep.subr.mxu0 0.0
    %620 = vmatpush1.msra.mxu0 0.0
    %621 = vmatprep.subr.mxu0 0.0
    %622 = vmatpush1.msra.mxu0 0.0
    %623 = vmatprep.subr.mxu0 0.0
    %624 = vmatpush1.msra.mxu0 0.0
    %625 = vmatprep.mubr.f32.mxu0 0.0
    %626 = vmatmul.mubr.f32.gmra.mrb[0].mxu0 %v553
    %v627 = vpop.f32.mrb[0].mxu0
    %v628 = vadd.f32 %v549, %v627
    %v629 = vpop.f32.mrb[0].mxu0
    %v630 = vadd.f32 %v551, %v629
    %631 = vdwg.mxu0
    %632 = vset.pattern.permute.xlu0 4
    %633 = vperm.xlu0 %632, %v48
    %v634 = vpop.permute.xlu0 %633
    %v635 = vrot.slane %v634, 5
    %v637 = vadd.f32 %v628, %v635
    %v638 = vadd.f32 %v630, %v635
    %v639 = vmax.f32 %v637, 0.0
    %v640 = vmax.f32 %v638, 0.0
    %vm641 = vcmask 253952
    %642 = vst.msk [vmem:[#allocation2] sm:$0x1] %vm641, %v639
    %643 = vst.msk [vmem:[#allocation2 + $0x1] sm:$0x1] %vm641, %v640
    %645 = vrot.lane.b32.xlu0 %v639, 96
    %v646 = vpop.permute.xlu0 %645
    %648 = vst.msk [vmem:[#allocation2 + $0x2] sm:$0x1] %vm641, %v646
    %650 = vrot.lane.b32.xlu0 %v640, 96
    %v651 = vpop.permute.xlu0 %650
    %653 = vst.msk [vmem:[#allocation2 + $0x3] sm:$0x1] %vm641, %v651
    %654 = vrot.lane.b32.xlu0 %v639, 64
    %v655 = vpop.permute.xlu0 %654
    %657 = vst.msk [vmem:[#allocation2 + $0x4] sm:$0x1] %vm641, %v655
    %658 = vrot.lane.b32.xlu0 %v640, 64
    %v659 = vpop.permute.xlu0 %658
    %661 = vst.msk [vmem:[#allocation2 + $0x5] sm:$0x1] %vm641, %v659
    %662 = vrot.lane.b32.xlu0 %v639, 32
    %v663 = vpop.permute.xlu0 %662
    %665 = vst.msk [vmem:[#allocation2 + $0x6] sm:$0x1] %vm641, %v663
    %666 = vrot.lane.b32.xlu0 %v640, 32
    %v667 = vpop.permute.xlu0 %666
    %669 = vst.msk [vmem:[#allocation2 + $0x7] sm:$0x1] %vm641, %v667
    %v670 = vld [vmem:[#allocation2] sm:$0xff]
    %v671 = vld [vmem:[%s2] sm:$0xff]
    %v672 = vld [vmem:[%s2 + $0x8] sm:$0xff]
    %v673 = vld [vmem:[%s2 + $0x10] sm:$0xff]
    %v674 = vld [vmem:[%s2 + $0x18] sm:$0xff]
    %v675 = vld [vmem:[%s2 + $0x20] sm:$0xff]
    %v676 = vld [vmem:[%s2 + $0x28] sm:$0xff]
    %v677 = vld [vmem:[%s2 + $0x30] sm:$0xff]
    %v678 = vld [vmem:[%s2 + $0x38] sm:$0xff]
    %v679 = vlaneseq
    %v680 = vshrl.u32 %v679, 7
    %v681 = vsub.s32 0, %v680
    %v682 = vrot.slane %v48, %v681
    %vm683 = vcmask 261120
    %v685 = vsel %vm683, %v670, 0
    %687 = vmatprep.subr.mxu0 0.0
    %688 = vmatpush1.msra.mxu0 %v671
    %689 = vmatprep.subr.mxu0 0.0
    %690 = vmatpush1.msra.mxu0 %v672
    %691 = vmatprep.subr.mxu0 0.0
    %692 = vmatpush1.msra.mxu0 %v673
    %693 = vmatprep.subr.mxu0 0.0
    %694 = vmatpush1.msra.mxu0 %v674
    %695 = vmatprep.subr.mxu0 0.0
    %696 = vmatpush1.msra.mxu0 0.0
    %697 = vmatprep.subr.mxu0 0.0
    %698 = vmatpush1.msra.mxu0 0.0
    %699 = vmatprep.subr.mxu0 0.0
    %700 = vmatpush1.msra.mxu0 0.0
    %701 = vmatprep.subr.mxu0 0.0
    %702 = vmatpush1.msra.mxu0 0.0
    %703 = vmatprep.subr.mxu0 0.0
    %704 = vmatpush1.msra.mxu0 0.0
    %705 = vmatprep.subr.mxu0 0.0
    %706 = vmatpush1.msra.mxu0 0.0
    %707 = vmatprep.subr.mxu0 0.0
    %708 = vmatpush1.msra.mxu0 0.0
    %709 = vmatprep.subr.mxu0 0.0
    %710 = vmatpush1.msra.mxu0 0.0
    %711 = vmatprep.subr.mxu0 0.0
    %712 = vmatpush1.msra.mxu0 0.0
    %713 = vmatprep.subr.mxu0 0.0
    %714 = vmatpush1.msra.mxu0 0.0
    %715 = vmatprep.subr.mxu0 0.0
    %716 = vmatpush1.msra.mxu0 0.0
    %717 = vmatprep.subr.mxu0 0.0
    %718 = vmatpush1.msra.mxu0 0.0
    %719 = vmatprep.subr.mxu0 0.0
    %720 = vmatpush1.msra.mxu0 0.0
    %721 = vmatprep.subr.mxu0 0.0
    %722 = vmatpush1.msra.mxu0 0.0
    %723 = vmatprep.subr.mxu0 0.0
    %724 = vmatpush1.msra.mxu0 0.0
    %725 = vmatprep.subr.mxu0 0.0
    %726 = vmatpush1.msra.mxu0 0.0
    %727 = vmatprep.subr.mxu0 0.0
    %728 = vmatpush1.msra.mxu0 0.0
    %729 = vmatprep.subr.mxu0 0.0
    %730 = vmatpush1.msra.mxu0 0.0
    %731 = vmatprep.subr.mxu0 0.0
    %732 = vmatpush1.msra.mxu0 0.0
    %733 = vmatprep.subr.mxu0 0.0
    %734 = vmatpush1.msra.mxu0 0.0
    %735 = vmatprep.subr.mxu0 0.0
    %736 = vmatpush1.msra.mxu0 0.0
    %737 = vmatprep.subr.mxu0 0.0
    %738 = vmatpush1.msra.mxu0 0.0
    %739 = vmatprep.subr.mxu0 0.0
    %740 = vmatpush1.msra.mxu0 0.0
    %741 = vmatprep.subr.mxu0 0.0
    %742 = vmatpush1.msra.mxu0 0.0
    %743 = vmatprep.subr.mxu0 0.0
    %744 = vmatpush1.msra.mxu0 0.0
    %745 = vmatprep.subr.mxu0 0.0
    %746 = vmatpush1.msra.mxu0 0.0
    %747 = vmatprep.subr.mxu0 0.0
    %748 = vmatpush1.msra.mxu0 0.0
    %749 = vmatprep.subr.mxu0 0.0
    %750 = vmatpush1.msra.mxu0 0.0
    %751 = vmatprep.mubr.f32.mxu0 0.0
    %752 = vmatmul.mubr.f32.gmra.mrb[0].mxu0 %v685
    %v753 = vpop.f32.mrb[0].mxu0
    %v754 = vadd.f32 %v682, %v753
    %v755 = vpop.f32.mrb[0].mxu0
    %756 = vdwg.mxu0
    %v757 = vlaneseq
    %v758 = vshrl.u32 %v757, 7
    %v759 = vsub.s32 1, %v758
    %v760 = vrot.slane %v48, %v759
    %v762 = vsel %vm683, 0.0, 0
    %764 = vmatprep.subr.mxu0 0.0
    %765 = vmatpush1.msra.mxu0 %v675
    %766 = vmatprep.subr.mxu0 0.0
    %767 = vmatpush1.msra.mxu0 %v676
    %768 = vmatprep.subr.mxu0 0.0
    %769 = vmatpush1.msra.mxu0 %v677
    %770 = vmatprep.subr.mxu0 0.0
    %771 = vmatpush1.msra.mxu0 %v678
    %772 = vmatprep.subr.mxu0 0.0
    %773 = vmatpush1.msra.mxu0 0.0
    %774 = vmatprep.subr.mxu0 0.0
    %775 = vmatpush1.msra.mxu0 0.0
    %776 = vmatprep.subr.mxu0 0.0
    %777 = vmatpush1.msra.mxu0 0.0
    %778 = vmatprep.subr.mxu0 0.0
    %779 = vmatpush1.msra.mxu0 0.0
    %780 = vmatprep.subr.mxu0 0.0
    %781 = vmatpush1.msra.mxu0 0.0
    %782 = vmatprep.subr.mxu0 0.0
    %783 = vmatpush1.msra.mxu0 0.0
    %784 = vmatprep.subr.mxu0 0.0
    %785 = vmatpush1.msra.mxu0 0.0
    %786 = vmatprep.subr.mxu0 0.0
    %787 = vmatpush1.msra.mxu0 0.0
    %788 = vmatprep.subr.mxu0 0.0
    %789 = vmatpush1.msra.mxu0 0.0
    %790 = vmatprep.subr.mxu0 0.0
    %791 = vmatpush1.msra.mxu0 0.0
    %792 = vmatprep.subr.mxu0 0.0
    %793 = vmatpush1.msra.mxu0 0.0
    %794 = vmatprep.subr.mxu0 0.0
    %795 = vmatpush1.msra.mxu0 0.0
    %796 = vmatprep.subr.mxu0 0.0
    %797 = vmatpush1.msra.mxu0 0.0
    %798 = vmatprep.subr.mxu0 0.0
    %799 = vmatpush1.msra.mxu0 0.0
    %800 = vmatprep.subr.mxu0 0.0
    %801 = vmatpush1.msra.mxu0 0.0
    %802 = vmatprep.subr.mxu0 0.0
    %803 = vmatpush1.msra.mxu0 0.0
    %804 = vmatprep.subr.mxu0 0.0
    %805 = vmatpush1.msra.mxu0 0.0
    %806 = vmatprep.subr.mxu0 0.0
    %807 = vmatpush1.msra.mxu0 0.0
    %808 = vmatprep.subr.mxu0 0.0
    %809 = vmatpush1.msra.mxu0 0.0
    %810 = vmatprep.subr.mxu0 0.0
    %811 = vmatpush1.msra.mxu0 0.0
    %812 = vmatprep.subr.mxu0 0.0
    %813 = vmatpush1.msra.mxu0 0.0
    %814 = vmatprep.subr.mxu0 0.0
    %815 = vmatpush1.msra.mxu0 0.0
    %816 = vmatprep.subr.mxu0 0.0
    %817 = vmatpush1.msra.mxu0 0.0
    %818 = vmatprep.subr.mxu0 0.0
    %819 = vmatpush1.msra.mxu0 0.0
    %820 = vmatprep.subr.mxu0 0.0
    %821 = vmatpush1.msra.mxu0 0.0
    %822 = vmatprep.subr.mxu0 0.0
    %823 = vmatpush1.msra.mxu0 0.0
    %824 = vmatprep.subr.mxu0 0.0
    %825 = vmatpush1.msra.mxu0 0.0
    %826 = vmatprep.subr.mxu0 0.0
    %827 = vmatpush1.msra.mxu0 0.0
    %828 = vmatprep.mubr.f32.mxu0 0.0
    %829 = vmatmul.mubr.f32.gmra.mrb[0].mxu0 %v762
    %v830 = vpop.f32.mrb[0].mxu0
    %v831 = vadd.f32 %v760, %v830
    %v832 = vpop.f32.mrb[0].mxu0
    %833 = vdwg.mxu0
    %v834 = vadd.f32 %v754, %v831
    %v835 = vxor.u32 %v834, 2147483648
    %v836 = vmul.f32 %v835, 1.442695
    %v837 = vpow.pop %v836
    %v838 = vadd.f32 %v837, 1.0
    %v839 = vrcp.pop %v838
    %v840 = vmul.f32 1.0, %v839
    %842 = vrot.lane.b32.xlu0 %v831, 64
    %v843 = vpop.permute.xlu0 %842
    %v845 = vmul.f32 %v840, %v843
    %847 = vrot.lane.b32.xlu0 %v845, 64
    %v848 = vpop.permute.xlu0 %847
    %v850 = vadd.f32 %v754, %v848
    %v851 = vtanh.pop %v850
    %v852 = vsub.f32 1.0, %v840
    %854 = vrot.lane.b32.xlu0 %v851, 96
    %v855 = vpop.permute.xlu0 %854
    %v857 = vmul.f32 %v852, %v855
    %v858 = vmul.f32 %v840, 0.0
    %v859 = vadd.f32 %v857, %v858
    %861 = vrot.lane.b32.xlu0 %v859, 96
    %v862 = vpop.permute.xlu0 %861
    %v863 = vsel %vm683, %v862, 0
    %865 = vmatprep.subr.mxu0 0.0
    %866 = vmatpush1.msra.mxu0 %v675
    %867 = vmatprep.subr.mxu0 0.0
    %868 = vmatpush1.msra.mxu0 %v676
    %869 = vmatprep.subr.mxu0 0.0
    %870 = vmatpush1.msra.mxu0 %v677
    %871 = vmatprep.subr.mxu0 0.0
    %872 = vmatpush1.msra.mxu0 %v678
    %873 = vmatprep.subr.mxu0 0.0
    %874 = vmatpush1.msra.mxu0 0.0
    %875 = vmatprep.subr.mxu0 0.0
    %876 = vmatpush1.msra.mxu0 0.0
    %877 = vmatprep.subr.mxu0 0.0
    %878 = vmatpush1.msra.mxu0 0.0
    %879 = vmatprep.subr.mxu0 0.0
    %880 = vmatpush1.msra.mxu0 0.0
    %881 = vmatprep.subr.mxu0 0.0
    %882 = vmatpush1.msra.mxu0 0.0
    %883 = vmatprep.subr.mxu0 0.0
    %884 = vmatpush1.msra.mxu0 0.0
    %885 = vmatprep.subr.mxu0 0.0
    %886 = vmatpush1.msra.mxu0 0.0
    %887 = vmatprep.subr.mxu0 0.0
    %888 = vmatpush1.msra.mxu0 0.0
    %889 = vmatprep.subr.mxu0 0.0
    %890 = vmatpush1.msra.mxu0 0.0
    %891 = vmatprep.subr.mxu0 0.0
    %892 = vmatpush1.msra.mxu0 0.0
    %893 = vmatprep.subr.mxu0 0.0
    %894 = vmatpush1.msra.mxu0 0.0
    %895 = vmatprep.subr.mxu0 0.0
    %896 = vmatpush1.msra.mxu0 0.0
    %897 = vmatprep.subr.mxu0 0.0
    %898 = vmatpush1.msra.mxu0 0.0
    %899 = vmatprep.subr.mxu0 0.0
    %900 = vmatpush1.msra.mxu0 0.0
    %901 = vmatprep.subr.mxu0 0.0
    %902 = vmatpush1.msra.mxu0 0.0
    %903 = vmatprep.subr.mxu0 0.0
    %904 = vmatpush1.msra.mxu0 0.0
    %905 = vmatprep.subr.mxu0 0.0
    %906 = vmatpush1.msra.mxu0 0.0
    %907 = vmatprep.subr.mxu0 0.0
    %908 = vmatpush1.msra.mxu0 0.0
    %909 = vmatprep.subr.mxu0 0.0
    %910 = vmatpush1.msra.mxu0 0.0
    %911 = vmatprep.subr.mxu0 0.0
    %912 = vmatpush1.msra.mxu0 0.0
    %913 = vmatprep.subr.mxu0 0.0
    %914 = vmatpush1.msra.mxu0 0.0
    %915 = vmatprep.subr.mxu0 0.0
    %916 = vmatpush1.msra.mxu0 0.0
    %917 = vmatprep.subr.mxu0 0.0
    %918 = vmatpush1.msra.mxu0 0.0
    %919 = vmatprep.subr.mxu0 0.0
    %920 = vmatpush1.msra.mxu0 0.0
    %921 = vmatprep.subr.mxu0 0.0
    %922 = vmatpush1.msra.mxu0 0.0
    %923 = vmatprep.subr.mxu0 0.0
    %924 = vmatpush1.msra.mxu0 0.0
    %925 = vmatprep.subr.mxu0 0.0
    %926 = vmatpush1.msra.mxu0 0.0
    %927 = vmatprep.subr.mxu0 0.0
    %928 = vmatpush1.msra.mxu0 0.0
    %929 = vmatprep.mubr.f32.mxu0 0.0
    %930 = vmatmul.mubr.f32.gmra.mrb[0].mxu0 %v863
    %v931 = vpop.f32.mrb[0].mxu0
    %v932 = vadd.f32 %v760, %v931
    %v933 = vpop.f32.mrb[0].mxu0
    %934 = vdwg.mxu0
    %v936 = vrot.slane %v932, 6
    %v938 = vadd.f32 %v754, %v936
    %v939 = vxor.u32 %v938, 2147483648
    %v940 = vmul.f32 %v939, 1.442695
    %v941 = vpow.pop %v940
    %v942 = vadd.f32 %v941, 1.0
    %v943 = vrcp.pop %v942
    %v944 = vmul.f32 1.0, %v943
    %945 = vrot.lane.b32.xlu0 %v936, 64
    %v946 = vpop.permute.xlu0 %945
    %v948 = vmul.f32 %v944, %v946
    %950 = vrot.lane.b32.xlu0 %v948, 64
    %v951 = vpop.permute.xlu0 %950
    %v953 = vadd.f32 %v754, %v951
    %v954 = vtanh.pop %v953
    %v955 = vsub.f32 1.0, %v944
    %957 = vrot.lane.b32.xlu0 %v954, 96
    %v958 = vpop.permute.xlu0 %957
    %v960 = vmul.f32 %v955, %v958
    %v961 = vrot.slane %v859, 6
    %v963 = vmul.f32 %v944, %v961
    %v964 = vadd.f32 %v960, %v963
    %v966 = vrot.slane %v964, 2
    %967 = vrot.lane.b32.xlu0 %v966, 96
    %v968 = vpop.permute.xlu0 %967
    %v969 = vsel %vm683, %v968, 0
    %971 = vmatprep.subr.mxu0 0.0
    %972 = vmatpush1.msra.mxu0 %v675
    %973 = vmatprep.subr.mxu0 0.0
    %974 = vmatpush1.msra.mxu0 %v676
    %975 = vmatprep.subr.mxu0 0.0
    %976 = vmatpush1.msra.mxu0 %v677
    %977 = vmatprep.subr.mxu0 0.0
    %978 = vmatpush1.msra.mxu0 %v678
    %979 = vmatprep.subr.mxu0 0.0
    %980 = vmatpush1.msra.mxu0 0.0
    %981 = vmatprep.subr.mxu0 0.0
    %982 = vmatpush1.msra.mxu0 0.0
    %983 = vmatprep.subr.mxu0 0.0
    %984 = vmatpush1.msra.mxu0 0.0
    %985 = vmatprep.subr.mxu0 0.0
    %986 = vmatpush1.msra.mxu0 0.0
    %987 = vmatprep.subr.mxu0 0.0
    %988 = vmatpush1.msra.mxu0 0.0
    %989 = vmatprep.subr.mxu0 0.0
    %990 = vmatpush1.msra.mxu0 0.0
    %991 = vmatprep.subr.mxu0 0.0
    %992 = vmatpush1.msra.mxu0 0.0
    %993 = vmatprep.subr.mxu0 0.0
    %994 = vmatpush1.msra.mxu0 0.0
    %995 = vmatprep.subr.mxu0 0.0
    %996 = vmatpush1.msra.mxu0 0.0
    %997 = vmatprep.subr.mxu0 0.0
    %998 = vmatpush1.msra.mxu0 0.0
    %999 = vmatprep.subr.mxu0 0.0
    %1000 = vmatpush1.msra.mxu0 0.0
    %1001 = vmatprep.subr.mxu0 0.0
    %1002 = vmatpush1.msra.mxu0 0.0
    %1003 = vmatprep.subr.mxu0 0.0
    %1004 = vmatpush1.msra.mxu0 0.0
    %1005 = vmatprep.subr.mxu0 0.0
    %1006 = vmatpush1.msra.mxu0 0.0
    %1007 = vmatprep.subr.mxu0 0.0
    %1008 = vmatpush1.msra.mxu0 0.0
    %1009 = vmatprep.subr.mxu0 0.0
    %1010 = vmatpush1.msra.mxu0 0.0
    %1011 = vmatprep.subr.mxu0 0.0
    %1012 = vmatpush1.msra.mxu0 0.0
    %1013 = vmatprep.subr.mxu0 0.0
    %1014 = vmatpush1.msra.mxu0 0.0
    %1015 = vmatprep.subr.mxu0 0.0
    %1016 = vmatpush1.msra.mxu0 0.0
    %1017 = vmatprep.subr.mxu0 0.0
    %1018 = vmatpush1.msra.mxu0 0.0
    %1019 = vmatprep.subr.mxu0 0.0
    %1020 = vmatpush1.msra.mxu0 0.0
    %1021 = vmatprep.subr.mxu0 0.0
    %1022 = vmatpush1.msra.mxu0 0.0
    %1023 = vmatprep.subr.mxu0 0.0
    %1024 = vmatpush1.msra.mxu0 0.0
    %1025 = vmatprep.subr.mxu0 0.0
    %1026 = vmatpush1.msra.mxu0 0.0
    %1027 = vmatprep.subr.mxu0 0.0
    %1028 = vmatpush1.msra.mxu0 0.0
    %1029 = vmatprep.subr.mxu0 0.0
    %1030 = vmatpush1.msra.mxu0 0.0
    %1031 = vmatprep.subr.mxu0 0.0
    %1032 = vmatpush1.msra.mxu0 0.0
    %1033 = vmatprep.subr.mxu0 0.0
    %1034 = vmatpush1.msra.mxu0 0.0
    %1035 = vmatprep.mubr.f32.mxu0 0.0
    %1036 = vmatmul.mubr.f32.gmra.mrb[0].mxu0 %v969
    %v1037 = vpop.f32.mrb[0].mxu0
    %v1038 = vadd.f32 %v760, %v1037
    %v1039 = vpop.f32.mrb[0].mxu0
    %1040 = vdwg.mxu0
    %v1042 = vrot.slane %v1038, 4
    %v1044 = vadd.f32 %v754, %v1042
    %v1045 = vxor.u32 %v1044, 2147483648
    %v1046 = vmul.f32 %v1045, 1.442695
    %v1047 = vpow.pop %v1046
    %v1048 = vadd.f32 %v1047, 1.0
    %v1049 = vrcp.pop %v1048
    %v1050 = vmul.f32 1.0, %v1049
    %1051 = vrot.lane.b32.xlu0 %v1042, 64
    %v1052 = vpop.permute.xlu0 %1051
    %v1054 = vmul.f32 %v1050, %v1052
    %1056 = vrot.lane.b32.xlu0 %v1054, 64
    %v1057 = vpop.permute.xlu0 %1056
    %v1059 = vadd.f32 %v754, %v1057
    %v1060 = vtanh.pop %v1059
    %v1061 = vsub.f32 1.0, %v1050
    %1063 = vrot.lane.b32.xlu0 %v1060, 96
    %v1064 = vpop.permute.xlu0 %1063
    %v1066 = vmul.f32 %v1061, %v1064
    %v1067 = vrot.slane %v964, 6
    %v1069 = vmul.f32 %v1050, %v1067
    %v1070 = vadd.f32 %v1066, %v1069
    %v1072 = vrot.slane %v1070, 4
    %1073 = vrot.lane.b32.xlu0 %v1072, 96
    %v1074 = vpop.permute.xlu0 %1073
    %v1075 = vsel %vm683, %v1074, 0
    %1077 = vmatprep.subr.mxu0 0.0
    %1078 = vmatpush1.msra.mxu0 %v675
    %1079 = vmatprep.subr.mxu0 0.0
    %1080 = vmatpush1.msra.mxu0 %v676
    %1081 = vmatprep.subr.mxu0 0.0
    %1082 = vmatpush1.msra.mxu0 %v677
    %1083 = vmatprep.subr.mxu0 0.0
    %1084 = vmatpush1.msra.mxu0 %v678
    %1085 = vmatprep.subr.mxu0 0.0
    %1086 = vmatpush1.msra.mxu0 0.0
    %1087 = vmatprep.subr.mxu0 0.0
    %1088 = vmatpush1.msra.mxu0 0.0
    %1089 = vmatprep.subr.mxu0 0.0
    %1090 = vmatpush1.msra.mxu0 0.0
    %1091 = vmatprep.subr.mxu0 0.0
    %1092 = vmatpush1.msra.mxu0 0.0
    %1093 = vmatprep.subr.mxu0 0.0
    %1094 = vmatpush1.msra.mxu0 0.0
    %1095 = vmatprep.subr.mxu0 0.0
    %1096 = vmatpush1.msra.mxu0 0.0
    %1097 = vmatprep.subr.mxu0 0.0
    %1098 = vmatpush1.msra.mxu0 0.0
    %1099 = vmatprep.subr.mxu0 0.0
    %1100 = vmatpush1.msra.mxu0 0.0
    %1101 = vmatprep.subr.mxu0 0.0
    %1102 = vmatpush1.msra.mxu0 0.0
    %1103 = vmatprep.subr.mxu0 0.0
    %1104 = vmatpush1.msra.mxu0 0.0
    %1105 = vmatprep.subr.mxu0 0.0
    %1106 = vmatpush1.msra.mxu0 0.0
    %1107 = vmatprep.subr.mxu0 0.0
    %1108 = vmatpush1.msra.mxu0 0.0
    %1109 = vmatprep.subr.mxu0 0.0
    %1110 = vmatpush1.msra.mxu0 0.0
    %1111 = vmatprep.subr.mxu0 0.0
    %1112 = vmatpush1.msra.mxu0 0.0
    %1113 = vmatprep.subr.mxu0 0.0
    %1114 = vmatpush1.msra.mxu0 0.0
    %1115 = vmatprep.subr.mxu0 0.0
    %1116 = vmatpush1.msra.mxu0 0.0
    %1117 = vmatprep.subr.mxu0 0.0
    %1118 = vmatpush1.msra.mxu0 0.0
    %1119 = vmatprep.subr.mxu0 0.0
    %1120 = vmatpush1.msra.mxu0 0.0
    %1121 = vmatprep.subr.mxu0 0.0
    %1122 = vmatpush1.msra.mxu0 0.0
    %1123 = vmatprep.subr.mxu0 0.0
    %1124 = vmatpush1.msra.mxu0 0.0
    %1125 = vmatprep.subr.mxu0 0.0
    %1126 = vmatpush1.msra.mxu0 0.0
    %1127 = vmatprep.subr.mxu0 0.0
    %1128 = vmatpush1.msra.mxu0 0.0
    %1129 = vmatprep.subr.mxu0 0.0
    %1130 = vmatpush1.msra.mxu0 0.0
    %1131 = vmatprep.subr.mxu0 0.0
    %1132 = vmatpush1.msra.mxu0 0.0
    %1133 = vmatprep.subr.mxu0 0.0
    %1134 = vmatpush1.msra.mxu0 0.0
    %1135 = vmatprep.subr.mxu0 0.0
    %1136 = vmatpush1.msra.mxu0 0.0
    %1137 = vmatprep.subr.mxu0 0.0
    %1138 = vmatpush1.msra.mxu0 0.0
    %1139 = vmatprep.subr.mxu0 0.0
    %1140 = vmatpush1.msra.mxu0 0.0
    %1141 = vmatprep.mubr.f32.mxu0 0.0
    %1142 = vmatmul.mubr.f32.gmra.mrb[0].mxu0 %v1075
    %v1143 = vpop.f32.mrb[0].mxu0
    %v1144 = vadd.f32 %v760, %v1143
    %v1145 = vpop.f32.mrb[0].mxu0
    %1146 = vdwg.mxu0
    %v1148 = vrot.slane %v1144, 2
    %v1150 = vadd.f32 %v754, %v1148
    %v1151 = vxor.u32 %v1150, 2147483648
    %v1152 = vmul.f32 %v1151, 1.442695
    %v1153 = vpow.pop %v1152
    %v1154 = vadd.f32 %v1153, 1.0
    %v1155 = vrcp.pop %v1154
    %v1156 = vmul.f32 1.0, %v1155
    %1157 = vrot.lane.b32.xlu0 %v1148, 64
    %v1158 = vpop.permute.xlu0 %1157
    %v1160 = vmul.f32 %v1156, %v1158
    %1162 = vrot.lane.b32.xlu0 %v1160, 64
    %v1163 = vpop.permute.xlu0 %1162
    %v1165 = vadd.f32 %v754, %v1163
    %v1166 = vtanh.pop %v1165
    %v1167 = vsub.f32 1.0, %v1156
    %1169 = vrot.lane.b32.xlu0 %v1166, 96
    %v1170 = vpop.permute.xlu0 %1169
    %v1172 = vmul.f32 %v1167, %v1170
    %v1173 = vrot.slane %v1070, 6
    %v1175 = vmul.f32 %v1156, %v1173
    %v1176 = vadd.f32 %v1172, %v1175
    %v1177 = vld [vmem:[%s2 + $0x40] sm:$0xff]
    %v1178 = vld [vmem:[%s2 + $0x48] sm:$0xff]
    %v1179 = vld [vmem:[%s2 + $0x50] sm:$0xff]
    %v1180 = vld [vmem:[%s2 + $0x58] sm:$0xff]
    %v1181 = vlaneseq
    %v1182 = vshrl.u32 %v1181, 7
    %v1183 = vsub.s32 2, %v1182
    %v1184 = vrot.slane %v48, %v1183
    %v1186 = vrot.slane %v1176, 6
    %1187 = vrot.lane.b32.xlu0 %v1186, 96
    %v1188 = vpop.permute.xlu0 %1187
    %v1189 = vsel %vm683, %v1188, 0
    %1191 = vmatprep.subr.mxu0 0.0
    %1192 = vmatpush1.msra.mxu0 %v1177
    %1193 = vmatprep.subr.mxu0 0.0
    %1194 = vmatpush1.msra.mxu0 %v1178
    %1195 = vmatprep.subr.mxu0 0.0
    %1196 = vmatpush1.msra.mxu0 %v1179
    %1197 = vmatprep.subr.mxu0 0.0
    %1198 = vmatpush1.msra.mxu0 %v1180
    %1199 = vmatprep.subr.mxu0 0.0
    %1200 = vmatpush1.msra.mxu0 0.0
    %1201 = vmatprep.subr.mxu0 0.0
    %1202 = vmatpush1.msra.mxu0 0.0
    %1203 = vmatprep.subr.mxu0 0.0
    %1204 = vmatpush1.msra.mxu0 0.0
    %1205 = vmatprep.subr.mxu0 0.0
    %1206 = vmatpush1.msra.mxu0 0.0
    %1207 = vmatprep.subr.mxu0 0.0
    %1208 = vmatpush1.msra.mxu0 0.0
    %1209 = vmatprep.subr.mxu0 0.0
    %1210 = vmatpush1.msra.mxu0 0.0
    %1211 = vmatprep.subr.mxu0 0.0
    %1212 = vmatpush1.msra.mxu0 0.0
    %1213 = vmatprep.subr.mxu0 0.0
    %1214 = vmatpush1.msra.mxu0 0.0
    %1215 = vmatprep.subr.mxu0 0.0
    %1216 = vmatpush1.msra.mxu0 0.0
    %1217 = vmatprep.subr.mxu0 0.0
    %1218 = vmatpush1.msra.mxu0 0.0
    %1219 = vmatprep.subr.mxu0 0.0
    %1220 = vmatpush1.msra.mxu0 0.0
    %1221 = vmatprep.subr.mxu0 0.0
    %1222 = vmatpush1.msra.mxu0 0.0
    %1223 = vmatprep.subr.mxu0 0.0
    %1224 = vmatpush1.msra.mxu0 0.0
    %1225 = vmatprep.subr.mxu0 0.0
    %1226 = vmatpush1.msra.mxu0 0.0
    %1227 = vmatprep.subr.mxu0 0.0
    %1228 = vmatpush1.msra.mxu0 0.0
    %1229 = vmatprep.subr.mxu0 0.0
    %1230 = vmatpush1.msra.mxu0 0.0
    %1231 = vmatprep.subr.mxu0 0.0
    %1232 = vmatpush1.msra.mxu0 0.0
    %1233 = vmatprep.subr.mxu0 0.0
    %1234 = vmatpush1.msra.mxu0 0.0
    %1235 = vmatprep.subr.mxu0 0.0
    %1236 = vmatpush1.msra.mxu0 0.0
    %1237 = vmatprep.subr.mxu0 0.0
    %1238 = vmatpush1.msra.mxu0 0.0
    %1239 = vmatprep.subr.mxu0 0.0
    %1240 = vmatpush1.msra.mxu0 0.0
    %1241 = vmatprep.subr.mxu0 0.0
    %1242 = vmatpush1.msra.mxu0 0.0
    %1243 = vmatprep.subr.mxu0 0.0
    %1244 = vmatpush1.msra.mxu0 0.0
    %1245 = vmatprep.subr.mxu0 0.0
    %1246 = vmatpush1.msra.mxu0 0.0
    %1247 = vmatprep.subr.mxu0 0.0
    %1248 = vmatpush1.msra.mxu0 0.0
    %1249 = vmatprep.subr.mxu0 0.0
    %1250 = vmatpush1.msra.mxu0 0.0
    %1251 = vmatprep.subr.mxu0 0.0
    %1252 = vmatpush1.msra.mxu0 0.0
    %1253 = vmatprep.subr.mxu0 0.0
    %1254 = vmatpush1.msra.mxu0 0.0
    %1255 = vmatprep.mubr.f32.mxu0 0.0
    %1256 = vmatmul.mubr.f32.gmra.mrb[0].mxu0 %v1189
    %v1257 = vpop.f32.mrb[0].mxu0
    %v1258 = vadd.f32 %v1184, %v1257
    %v1259 = vpop.f32.mrb[0].mxu0
    %1260 = vdwg.mxu0
    %v1261 = vsel %vm475, %v1258, -inf
    %1262 = vmax.xlane.f32.xlu0 %v1261
    %v1263 = vpop.xlane.xlu0 %1262
    %v1264 = vsub.f32 %v1258, %v1263
    %v1265 = vmul.f32 %v1264, 1.442695
    %v1266 = vpow.pop %v1265
    %v1267 = vsel %vm475, %v1266, 0.0
    %1268 = vadd.xlane.f32.xlu0 %v1267
    %v1269 = vpop.xlane.xlu0 %1268
    %v1270 = vrcp.pop %v1269
    %v1271 = vmul.f32 %v1266, %v1270
    %1272 = vst [vmem:[#allocation3] sm:$0x3] %v1271
    // Predicated region
    $region14: #{test_model_forward.1} parent=1 // pred_check
      _
    $region15: #{test_model_forward.1} parent=1 // pred_check_branch
      %1274 = sbr.rel (0) target = $region17
    $region16: #{test_model_forward.1} parent=1 // pred_region
      %s1276 = ssub.s32 32, 32
      %1277 = vsyncadd [#allocation4], %s1276
      %s1279 = sshll.u32 [#allocation3], 4
      %s1280 = int_to_ptr.vmem [resolvable:$true] %s1279
      %1282 = dma.vmem_to_hbm [thread:$0]  %s1280, 32, %s3, [#allocation4]
    $region17: #{test_model_forward.1} parent=1 // pred_fallthru
      _
    // Predicated region
    $region18: #{test_model_forward.1} parent=1 // pred_check
      _
    $region19: #{test_model_forward.1} parent=1 // pred_check_branch
      %1284 = sbr.rel (0) target = $region21
    $region20: #{test_model_forward.1} parent=1 // pred_region
      %1285 = dma.done [#allocation4], 32
    $region21: #{test_model_forward.1} parent=1 // pred_fallthru
      _
    %1286 = vsyncpa [#allocation4], 1

</llo_original>
